<compile_context>
chip_gen: v7x
topology: tpu7x:2x2x1
jax: 0.10.0
libtpu: 0.0.40
codegen_flags: <defaults>
</compile_context>

<pallas_src>
import math

import jax
import jax.numpy as jnp
from jax.experimental import pallas as pl
from jax.experimental.pallas import tpu as pltpu


FP = 128  # lane padding per real/imag half of the DFT output (2*FP = 256 total lanes)

STFT_CONFIGS = [
    {"fft_size": 16, "hop_length": 8, "window_length": 16},
    {"fft_size": 32, "hop_length": 16, "window_length": 32},
]


# ----------------------------- predictor (fused) -------------------------------------

def _predictor_kernel(local_ref, src_ref, w1_ref, b1_ref, w2_ref, out_ref):
    # local: [B*TL, C] -> hidden [B*TL, H] -> proj [B*TL, 1]
    h = jnp.tanh(
        jnp.dot(local_ref[...], w1_ref[...], preferred_element_type=jnp.float32)
        + b1_ref[...]
    )
    proj = jnp.dot(h, w2_ref[...], preferred_element_type=jnp.float32)   # [B*TL, 1]
    # nearest-neighbour upsample = broadcast along lanes; combine with source excitation.
    out_ref[...] = jnp.tanh(src_ref[...] + proj)                         # [B*TL, scale]


def predictor_forward(source, local, params):
    """Stand-in Predictor: tanh(source + upsample(MLP(local))), one fused kernel."""
    B, T = source.shape
    _, TL, C = local.shape
    assert T % TL == 0
    scale = T // TL
    w1, b1, w2 = params

    out2d = pl.pallas_call(
        _predictor_kernel,
        out_shape=jax.ShapeDtypeStruct((B * TL, scale), jnp.float32),
        in_specs=[pl.BlockSpec(memory_space=pltpu.MemorySpace.VMEM)] * 5,
        out_specs=pl.BlockSpec(memory_space=pltpu.MemorySpace.VMEM),
    )(local.reshape(B * TL, C), source.reshape(B * TL, scale), w1, b1, w2)
    return out2d.reshape(B, T)


# ----------------------------- STFT loss (fused, gridded) ----------------------------

def _dft_matrix(fft_size, win, fp):
    """[win, 2*fp] matrix: cols [0:F) = win*cos, cols [fp:fp+F) = -win*sin, rest zero."""
    F = fft_size // 2 + 1
    n = jnp.arange(win, dtype=jnp.float32)
    f = jnp.arange(F, dtype=jnp.float32)
    window = 0.5 - 0.5 * jnp.cos(2.0 * math.pi * n / win)   # torch.hann_window (periodic)
    ang = 2.0 * math.pi * n[:, None] * f[None, :] / fft_size
    cos_m = window[:, None] * jnp.cos(ang)
    sin_m = -window[:, None] * jnp.sin(ang)
    pad = [(0, 0), (0, fp - F)]
    return jnp.concatenate([jnp.pad(cos_m, pad), jnp.pad(sin_m, pad)], axis=1)


def _frame_keep_mask(sil_f32, hop, k, nf):
    """[B, nf, 1] float mask: 1.0 if frame has at least one non-silent sample."""
    # note: original stft_mask's as_strided batch stride looks buggy for B>1; we use the
    #       intended per-batch framing.
    B, T = sil_f32.shape
    nc = T // hop
    cmin = jnp.min(sil_f32.reshape(B, nc, hop), axis=2)      # (B, nc), 1.0 = chunk all silent
    fmin = cmin[:, 0:nf]
    for j in range(1, k):
        fmin = jnp.minimum(fmin, cmin[:, j:j + nf])
    return (fmin < 0.5).astype(jnp.float32).reshape(B, nf, 1)


def _make_stft_loss_kernel(cfgs, fp):
    n_cfg = len(cfgs)
    eps = 1e-6
    thr = 1e-6

    def kernel(*refs):
        # refs: per config (x_chunks, t_chunks, s_chunks, keep_mask, W), then loss_ref,
        #       then scratch: sum_0..sum_{n-1}, cnt_0..cnt_{n-1}
        loss_ref = refs[5 * n_cfg]
        sum_refs = refs[5 * n_cfg + 1: 5 * n_cfg + 1 + n_cfg]
        cnt_refs = refs[5 * n_cfg + 1 + n_cfg: 5 * n_cfg + 1 + 2 * n_cfg]

        b = pl.program_id(0)
        nb = pl.num_programs(0)

        @pl.when(b == 0)
        def _init():
            for c in range(n_cfg):
                sum_refs[c][...] = jnp.zeros_like(sum_refs[c])
                cnt_refs[c][...] = jnp.zeros_like(cnt_refs[c])
            loss_ref[...] = jnp.zeros_like(loss_ref)

        for c, (fft, hop, win) in enumerate(cfgs):
            k = win // hop
            x_ref, t_ref, s_ref, m_ref, w_ref = refs[5 * c: 5 * c + 5]
            xc = x_ref[0]                     # (nc, hop) chunked output
            tc = t_ref[0]                     # (nc, hop) chunked wave
            sc = s_ref[0]                     # (nc, hop) chunked signal
            keep = m_ref[0]                   # (nf, 1)   1.0 = frame kept
            W = w_ref[...]                    # (win, 2*fp) resident DFT matrix
            nc = xc.shape[0]
            nf = nc - k + 1

            # fused lane-dense DFT: frames assembled via chunk-shifted matmuls,
            # output | wave | signal stacked into one LHS -> one MXU call per shift.
            freq = None
            for j in range(k):
                lhs = jnp.concatenate(
                    [xc[j:j + nf], tc[j:j + nf], sc[j:j + nf]], axis=0)   # (3*nf, hop)
                part = jnp.dot(lhs, W[j * hop:(j + 1) * hop, :],
                               preferred_element_type=jnp.float32)        # (3*nf, 2*fp)
                freq = part if freq is None else freq + part

            real = freq[:, :fp]
            imag = freq[:, fp:]
            amp = real * real + imag * imag                 # (3*nf, fp)
            x_amp = amp[0:nf] + eps                         # stft(output) amplitude
            t_amp = amp[nf:2 * nf] + eps                    # stft(wave)   amplitude
            s_amp = amp[2 * nf:3 * nf]                      # stft(signal) amplitude

            # stft_weight: per-frame max over frequency (padded cols are 0 -> harmless)
            m = jnp.max(s_amp, axis=1, keepdims=True)                      # (nf, 1)
            weight = jnp.where(m > thr, s_amp / jnp.maximum(m, thr), 0.0)  # (nf, fp)

            # amplitude_distance: single log (padded cols give log(eps/eps)=0 exactly)
            diff = jnp.log(x_amp / t_amp) ** 2 * (1.0 + weight)
            masked = diff * keep

            sum_refs[c][...] += jnp.sum(masked, axis=(0, 1), keepdims=True)
            cnt_refs[c][...] += jnp.sum(keep, axis=(0, 1), keepdims=True)

        @pl.when(b == nb - 1)
        def _finalize():
            total = jnp.zeros((1, 1), jnp.float32)
            for c, (fft, hop, win) in enumerate(cfgs):
                n_freq = float(fft // 2 + 1)
                cnt = jnp.maximum(cnt_refs[c][...], 1.0)   # guard all-silent degenerate case
                total = total + sum_refs[c][...] / (cnt * n_freq) * 0.5
            loss_ref[...] = total / float(n_cfg)

    return kernel


def stft_loss_fused(output, wave, signal, sil_f32, cfgs, fp=FP):
    B, T = wave.shape
    n_cfg = len(cfgs)

    inputs, in_specs = [], []
    for cfg in cfgs:
        fft, hop, win = cfg["fft_size"], cfg["hop_length"], cfg["window_length"]
        assert win == fft, "this implementation assumes window_length == fft_size"
        assert win % hop == 0 and T % hop == 0
        assert fft // 2 + 1 <= fp
        k = win // hop
        nc = T // hop
        nf = nc - k + 1
        for arr in (output, wave, signal):
            inputs.append(arr.reshape(B, nc, hop))         # free contiguous chunk view
            in_specs.append(pl.BlockSpec((1, nc, hop), lambda b: (b, 0, 0)))
        inputs.append(_frame_keep_mask(sil_f32, hop, k, nf))
        in_specs.append(pl.BlockSpec((1, nf, 1), lambda b: (b, 0, 0)))
        inputs.append(_dft_matrix(fft, win, fp))
        in_specs.append(pl.BlockSpec((win, 2 * fp), lambda b: (0, 0)))   # resident

    kernel = _make_stft_loss_kernel(
        tuple((c["fft_size"], c["hop_length"], c["window_length"]) for c in cfgs), fp)

    loss = pl.pallas_call(
        kernel,
        out_shape=jax.ShapeDtypeStruct((1, 1), jnp.float32),
        grid_spec=pltpu.PrefetchScalarGridSpec(
            num_scalar_prefetch=0,
            grid=(B,),
            in_specs=in_specs,
            out_specs=pl.BlockSpec((1, 1), lambda b: (0, 0)),
            scratch_shapes=[pltpu.VMEM((1, 1), jnp.float32)] * (2 * n_cfg),
        ),
        compiler_params=pltpu.CompilerParams(dimension_semantics=("arbitrary",)),
    )(*inputs)
    return loss[0, 0]


# ----------------------------- model forward ------------------------------------------

def model_forward(wave, silence, local, source, source2, signal, params):
    # model_config: eliminate_silence=True, use_stft_weight=True, discriminator_input_type=None
    del source2  # unused by Model.forward (matches reference)
    output = predictor_forward(source, local, params)
    loss = stft_loss_fused(output, wave, signal, silence.astype(jnp.float32), STFT_CONFIGS)
    # TODO(synk): adversarial-loss branch (Discriminator) and report() have no provided
    #             definitions; only the STFT loss path is implemented.
    return loss


# ----------------------------- main ----------------------------------------------------

if __name__ == "__main__":
    key = jax.random.PRNGKey(0)
    B, T, TL, C, H = 2, 128, 16, 8, 16
    ks = jax.random.split(key, 7)

    wave = jax.random.normal(ks[0], (B, T), jnp.float32) * 0.1
    source = jax.random.normal(ks[1], (B, T), jnp.float32) * 0.1
    source2 = jax.random.normal(ks[2], (B, T), jnp.float32) * 0.1
    signal = jax.random.normal(ks[3], (B, T), jnp.float32) * 0.1
    local = jax.random.normal(ks[4], (B, TL, C), jnp.float32)
    silence = jnp.arange(T)[None, :].repeat(B, axis=0) < 16   # first 16 samples are silent

    # deterministic predictor parameters
    w1 = jax.random.normal(ks[5], (C, H), jnp.float32) * 0.1
    b1 = jnp.zeros((1, H), jnp.float32)
    w2 = jax.random.normal(ks[6], (H, 1), jnp.float32) * 0.1
    params = (w1, b1, w2)

    loss = jax.jit(model_forward)(wave, silence, local, source, source2, signal, params)
    jax.block_until_ready(loss)
    print("KERNEL_OK")
</pallas_src>

<mosaic_0001>
module attributes {stable_mosaic.version = 11 : i64} {
  func.func @_predictor_kernel(%arg0: memref<32x8xf32, #tpu.memory_space<vmem>>, %arg1: memref<32x8xf32, #tpu.memory_space<vmem>>, %arg2: memref<8x16xf32, #tpu.memory_space<vmem>>, %arg3: memref<1x16xf32, #tpu.memory_space<vmem>>, %arg4: memref<16x1xf32, #tpu.memory_space<vmem>>, %arg5: memref<32x8xf32, #tpu.memory_space<vmem>>) attributes {dimension_semantics = [], scalar_prefetch = 0 : i64, scratch_operands = 0 : i64, tpu.core_type = #tpu.core_type<tc>} {
    %c0 = arith.constant 0 : index
    %c0_0 = arith.constant 0 : index
    %0 = vector.load %arg0[%c0, %c0_0] : memref<32x8xf32, #tpu.memory_space<vmem>>, vector<32x8xf32>
    %c0_1 = arith.constant 0 : index
    %c0_2 = arith.constant 0 : index
    %1 = vector.load %arg2[%c0_1, %c0_2] : memref<8x16xf32, #tpu.memory_space<vmem>>, vector<8x16xf32>
    %cst = arith.constant dense<0.000000e+00> : vector<32x16xf32>
    %2 = tpu.matmul %0, %1, %cst {dimension_numbers = #tpu.dot_dimension_numbers<[1], [0], [0], [1], [0, 0, 1, 1], [], []>} : vector<32x8xf32>, vector<8x16xf32>, vector<32x16xf32> -> vector<32x16xf32>
    %c0_3 = arith.constant 0 : index
    %c0_4 = arith.constant 0 : index
    %3 = vector.load %arg3[%c0_3, %c0_4] : memref<1x16xf32, #tpu.memory_space<vmem>>, vector<1x16xf32>
    %4 = vector.broadcast %3 : vector<1x16xf32> to vector<32x16xf32>
    %5 = arith.addf %2, %4 : vector<32x16xf32>
    %6 = math.tanh %5 : vector<32x16xf32>
    %c0_5 = arith.constant 0 : index
    %c0_6 = arith.constant 0 : index
    %7 = vector.load %arg4[%c0_5, %c0_6] : memref<16x1xf32, #tpu.memory_space<vmem>>, vector<16x1xf32>
    %cst_7 = arith.constant dense<0.000000e+00> : vector<32x1xf32>
    %8 = tpu.matmul %6, %7, %cst_7 {dimension_numbers = #tpu.dot_dimension_numbers<[1], [0], [0], [1], [0, 0, 1, 1], [], []>} : vector<32x16xf32>, vector<16x1xf32>, vector<32x1xf32> -> vector<32x1xf32>
    %c0_8 = arith.constant 0 : index
    %c0_9 = arith.constant 0 : index
    %9 = vector.load %arg1[%c0_8, %c0_9] : memref<32x8xf32, #tpu.memory_space<vmem>>, vector<32x8xf32>
    %10 = vector.broadcast %8 : vector<32x1xf32> to vector<32x8xf32>
    %11 = arith.addf %9, %10 : vector<32x8xf32>
    %12 = math.tanh %11 : vector<32x8xf32>
    %c0_10 = arith.constant 0 : index
    %c0_11 = arith.constant 0 : index
    %13 = vector.load %arg5[%c0_10, %c0_11] : memref<32x8xf32, #tpu.memory_space<vmem>>, vector<32x8xf32>
    tpu.vector_store %arg5[%c0_10, %c0_11], %12 {strides = array<i32>} : memref<32x8xf32, #tpu.memory_space<vmem>>, vector<32x8xf32>,
    return
  }
}

module attributes {stable_mosaic.version = 11 : i64} {
  func.func @kernel(%arg0: i32, %arg1: memref<1x16x8xf32, #tpu.memory_space<vmem>>, %arg2: memref<1x16x8xf32, #tpu.memory_space<vmem>>, %arg3: memref<1x16x8xf32, #tpu.memory_space<vmem>>, %arg4: memref<1x15x1xf32, #tpu.memory_space<vmem>>, %arg5: memref<16x256xf32, #tpu.memory_space<vmem>>, %arg6: memref<1x8x16xf32, #tpu.memory_space<vmem>>, %arg7: memref<1x8x16xf32, #tpu.memory_space<vmem>>, %arg8: memref<1x8x16xf32, #tpu.memory_space<vmem>>, %arg9: memref<1x7x1xf32, #tpu.memory_space<vmem>>, %arg10: memref<32x256xf32, #tpu.memory_space<vmem>>, %arg11: memref<1x1xf32, #tpu.memory_space<vmem>>, %arg12: memref<1x1xf32, #tpu.memory_space<vmem>>, %arg13: memref<1x1xf32, #tpu.memory_space<vmem>>, %arg14: memref<1x1xf32, #tpu.memory_space<vmem>>, %arg15: memref<1x1xf32, #tpu.memory_space<vmem>>) attributes {dimension_semantics = [#tpu.dimension_semantics<arbitrary>], iteration_bounds = array<i64: 2>, scalar_prefetch = 0 : i64, scratch_operands = 4 : i64, tpu.core_type = #tpu.core_type<tc>, window_params = [{transform_indices = @transform_0, window_bounds = array<i64: 1, 16, 8>}, {transform_indices = @transform_1, window_bounds = array<i64: 1, 16, 8>}, {transform_indices = @transform_2, window_bounds = array<i64: 1, 16, 8>}, {transform_indices = @transform_3, window_bounds = array<i64: 1, 15, 1>}, {pipeline_mode = #tpu.pipeline_mode<synchronous>, transform_indices = @transform_4, window_bounds = array<i64: 16, 256>}, {transform_indices = @transform_5, window_bounds = array<i64: 1, 8, 16>}, {transform_indices = @transform_6, window_bounds = array<i64: 1, 8, 16>}, {transform_indices = @transform_7, window_bounds = array<i64: 1, 8, 16>}, {transform_indices = @transform_8, window_bounds = array<i64: 1, 7, 1>}, {pipeline_mode = #tpu.pipeline_mode<synchronous>, transform_indices = @transform_9, window_bounds = array<i64: 32, 256>}, {pipeline_mode = #tpu.pipeline_mode<synchronous>, transform_indices = @transform_10, window_bounds = array<i64: 1, 1>}]} {
    %c0_i32 = arith.constant 0 : i32
    %0 = arith.cmpi eq, %arg0, %c0_i32 : i32
    %1 = arith.extui %0 : i1 to i32
    %c0_i32_0 = arith.constant 0 : i32
    %2 = arith.cmpi ne, %1, %c0_i32_0 : i32
    scf.if %2 {
      %cst_66 = arith.constant 0.000000e+00 : f32
      %146 = vector.broadcast %cst_66 : f32 to vector<1x1xf32>
      %c0_67 = arith.constant 0 : index
      %c0_68 = arith.constant 0 : index
      %147 = vector.load %arg12[%c0_67, %c0_68] : memref<1x1xf32, #tpu.memory_space<vmem>>, vector<1x1xf32>
      tpu.vector_store %arg12[%c0_67, %c0_68], %146 {strides = array<i32>} : memref<1x1xf32, #tpu.memory_space<vmem>>, vector<1x1xf32>,
      %cst_69 = arith.constant 0.000000e+00 : f32
      %148 = vector.broadcast %cst_69 : f32 to vector<1x1xf32>
      %c0_70 = arith.constant 0 : index
      %c0_71 = arith.constant 0 : index
      %149 = vector.load %arg14[%c0_70, %c0_71] : memref<1x1xf32, #tpu.memory_space<vmem>>, vector<1x1xf32>
      tpu.vector_store %arg14[%c0_70, %c0_71], %148 {strides = array<i32>} : memref<1x1xf32, #tpu.memory_space<vmem>>, vector<1x1xf32>,
      %cst_72 = arith.constant 0.000000e+00 : f32
      %150 = vector.broadcast %cst_72 : f32 to vector<1x1xf32>
      %c0_73 = arith.constant 0 : index
      %c0_74 = arith.constant 0 : index
      %151 = vector.load %arg13[%c0_73, %c0_74] : memref<1x1xf32, #tpu.memory_space<vmem>>, vector<1x1xf32>
      tpu.vector_store %arg13[%c0_73, %c0_74], %150 {strides = array<i32>} : memref<1x1xf32, #tpu.memory_space<vmem>>, vector<1x1xf32>,
      %cst_75 = arith.constant 0.000000e+00 : f32
      %152 = vector.broadcast %cst_75 : f32 to vector<1x1xf32>
      %c0_76 = arith.constant 0 : index
      %c0_77 = arith.constant 0 : index
      %153 = vector.load %arg15[%c0_76, %c0_77] : memref<1x1xf32, #tpu.memory_space<vmem>>, vector<1x1xf32>
      tpu.vector_store %arg15[%c0_76, %c0_77], %152 {strides = array<i32>} : memref<1x1xf32, #tpu.memory_space<vmem>>, vector<1x1xf32>,
      %cst_78 = arith.constant 0.000000e+00 : f32
      %154 = vector.broadcast %cst_78 : f32 to vector<1x1xf32>
      %c0_79 = arith.constant 0 : index
      %c0_80 = arith.constant 0 : index
      %155 = vector.load %arg11[%c0_79, %c0_80] : memref<1x1xf32, #tpu.memory_space<vmem>>, vector<1x1xf32>
      tpu.vector_store %arg11[%c0_79, %c0_80], %154 {strides = array<i32>} : memref<1x1xf32, #tpu.memory_space<vmem>>, vector<1x1xf32>,
    } else {
    }
    %c0 = arith.constant 0 : index
    %c0_1 = arith.constant 0 : index
    %c0_2 = arith.constant 0 : index
    %3 = vector.load %arg1[%c0, %c0_1, %c0_2] : memref<1x16x8xf32, #tpu.memory_space<vmem>>, vector<1x16x8xf32>
    %4 = vector.shape_cast %3 : vector<1x16x8xf32> to vector<16x8xf32>
    %c0_3 = arith.constant 0 : index
    %c0_4 = arith.constant 0 : index
    %c0_5 = arith.constant 0 : index
    %5 = vector.load %arg2[%c0_3, %c0_4, %c0_5] : memref<1x16x8xf32, #tpu.memory_space<vmem>>, vector<1x16x8xf32>
    %6 = vector.shape_cast %5 : vector<1x16x8xf32> to vector<16x8xf32>
    %c0_6 = arith.constant 0 : index
    %c0_7 = arith.constant 0 : index
    %c0_8 = arith.constant 0 : index
    %7 = vector.load %arg3[%c0_6, %c0_7, %c0_8] : memref<1x16x8xf32, #tpu.memory_space<vmem>>, vector<1x16x8xf32>
    %8 = vector.shape_cast %7 : vector<1x16x8xf32> to vector<16x8xf32>
    %c0_9 = arith.constant 0 : index
    %c0_10 = arith.constant 0 : index
    %c0_11 = arith.constant 0 : index
    %9 = vector.load %arg4[%c0_9, %c0_10, %c0_11] : memref<1x15x1xf32, #tpu.memory_space<vmem>>, vector<1x15x1xf32>
    %10 = vector.shape_cast %9 : vector<1x15x1xf32> to vector<15x1xf32>
    %c0_12 = arith.constant 0 : index
    %c0_13 = arith.constant 0 : index
    %11 = vector.load %arg5[%c0_12, %c0_13] : memref<16x256xf32, #tpu.memory_space<vmem>>, vector<16x256xf32>
    %12 = vector.extract_strided_slice %4 {offsets = [0, 0], sizes = [15, 8], strides = [1, 1]} : vector<16x8xf32> to vector<15x8xf32>
    %13 = vector.extract_strided_slice %6 {offsets = [0, 0], sizes = [15, 8], strides = [1, 1]} : vector<16x8xf32> to vector<15x8xf32>
    %14 = vector.extract_strided_slice %8 {offsets = [0, 0], sizes = [15, 8], strides = [1, 1]} : vector<16x8xf32> to vector<15x8xf32>
    %15 = tpu.concatenate %12, %13, %14 in 0 : vector<15x8xf32>, vector<15x8xf32>, vector<15x8xf32> -> vector<45x8xf32>
    %16 = vector.extract_strided_slice %11 {offsets = [0, 0], sizes = [8, 256], strides = [1, 1]} : vector<16x256xf32> to vector<8x256xf32>
    %cst = arith.constant dense<0.000000e+00> : vector<45x256xf32>
    %17 = tpu.matmul %15, %16, %cst {dimension_numbers = #tpu.dot_dimension_numbers<[1], [0], [0], [1], [0, 0, 1, 1], [], []>} : vector<45x8xf32>, vector<8x256xf32>, vector<45x256xf32> -> vector<45x256xf32>
    %18 = vector.extract_strided_slice %4 {offsets = [1, 0], sizes = [15, 8], strides = [1, 1]} : vector<16x8xf32> to vector<15x8xf32>
    %19 = vector.extract_strided_slice %6 {offsets = [1, 0], sizes = [15, 8], strides = [1, 1]} : vector<16x8xf32> to vector<15x8xf32>
    %20 = vector.extract_strided_slice %8 {offsets = [1, 0], sizes = [15, 8], strides = [1, 1]} : vector<16x8xf32> to vector<15x8xf32>
    %21 = tpu.concatenate %18, %19, %20 in 0 : vector<15x8xf32>, vector<15x8xf32>, vector<15x8xf32> -> vector<45x8xf32>
    %22 = vector.extract_strided_slice %11 {offsets = [8, 0], sizes = [8, 256], strides = [1, 1]} : vector<16x256xf32> to vector<8x256xf32>
    %cst_14 = arith.constant dense<0.000000e+00> : vector<45x256xf32>
    %23 = tpu.matmul %21, %22, %cst_14 {dimension_numbers = #tpu.dot_dimension_numbers<[1], [0], [0], [1], [0, 0, 1, 1], [], []>} : vector<45x8xf32>, vector<8x256xf32>, vector<45x256xf32> -> vector<45x256xf32>
    %24 = arith.addf %17, %23 : vector<45x256xf32>
    %25 = vector.extract_strided_slice %24 {offsets = [0, 0], sizes = [45, 128], strides = [1, 1]} : vector<45x256xf32> to vector<45x128xf32>
    %26 = vector.extract_strided_slice %24 {offsets = [0, 128], sizes = [45, 128], strides = [1, 1]} : vector<45x256xf32> to vector<45x128xf32>
    %27 = arith.mulf %25, %25 : vector<45x128xf32>
    %28 = arith.mulf %26, %26 : vector<45x128xf32>
    %29 = arith.addf %27, %28 : vector<45x128xf32>
    %30 = vector.extract_strided_slice %29 {offsets = [0, 0], sizes = [15, 128], strides = [1, 1]} : vector<45x128xf32> to vector<15x128xf32>
    %cst_15 = arith.constant 9.99999997E-7 : f32
    %31 = vector.broadcast %cst_15 : f32 to vector<15x128xf32>
    %32 = arith.addf %30, %31 : vector<15x128xf32>
    %33 = vector.extract_strided_slice %29 {offsets = [15, 0], sizes = [15, 128], strides = [1, 1]} : vector<45x128xf32> to vector<15x128xf32>
    %cst_16 = arith.constant 9.99999997E-7 : f32
    %34 = vector.broadcast %cst_16 : f32 to vector<15x128xf32>
    %35 = arith.addf %33, %34 : vector<15x128xf32>
    %36 = vector.extract_strided_slice %29 {offsets = [30, 0], sizes = [15, 128], strides = [1, 1]} : vector<45x128xf32> to vector<15x128xf32>
    %cst_17 = arith.constant dense<0xFF800000> : vector<15xf32>
    %37 = vector.multi_reduction <maximumf>, %36, %cst_17 [1] : vector<15x128xf32> to vector<15xf32>
    %38 = vector.shape_cast %37 : vector<15xf32> to vector<15x1xf32>
    %cst_18 = arith.constant 9.99999997E-7 : f32
    %39 = vector.broadcast %cst_18 : f32 to vector<15x1xf32>
    %40 = arith.cmpf ogt, %38, %39 : vector<15x1xf32>
    %cst_19 = arith.constant 9.99999997E-7 : f32
    %41 = vector.broadcast %cst_19 : f32 to vector<15x1xf32>
    %42 = arith.maximumf %38, %41 : vector<15x1xf32>
    %43 = vector.broadcast %42 : vector<15x1xf32> to vector<15x128xf32>
    %44 = arith.divf %36, %43 : vector<15x128xf32>
    %cst_20 = arith.constant 0.000000e+00 : f32
    %45 = vector.shape_cast %40 : vector<15x1xi1> to vector<15x1xi1>
    %46 = vector.broadcast %45 : vector<15x1xi1> to vector<15x128xi1>
    %47 = vector.broadcast %cst_20 : f32 to vector<15x128xf32>
    %48 = arith.select %46, %44, %47 : vector<15x128xi1>, vector<15x128xf32>
    %49 = arith.divf %32, %35 : vector<15x128xf32>
    %50 = math.log %49 : vector<15x128xf32>
    %51 = arith.mulf %50, %50 : vector<15x128xf32>
    %cst_21 = arith.constant 1.000000e+00 : f32
    %52 = vector.broadcast %cst_21 : f32 to vector<15x128xf32>
    %53 = arith.addf %52, %48 : vector<15x128xf32>
    %54 = arith.mulf %51, %53 : vector<15x128xf32>
    %55 = vector.broadcast %10 : vector<15x1xf32> to vector<15x128xf32>
    %56 = arith.mulf %54, %55 : vector<15x128xf32>
    %c0_22 = arith.constant 0 : index
    %c0_23 = arith.constant 0 : index
    %57 = vector.load %arg12[%c0_22, %c0_23] : memref<1x1xf32, #tpu.memory_space<vmem>>, vector<1x1xf32>
    %58 = vector.shape_cast %56 : vector<15x128xf32> to vector<1x15x128xf32>
    %cst_24 = arith.constant dense<0.000000e+00> : vector<1xf32>
    %59 = vector.multi_reduction <add>, %58, %cst_24 [1, 2] : vector<1x15x128xf32> to vector<1xf32>
    %60 = vector.shape_cast %59 : vector<1xf32> to vector<1x1x1xf32>
    %61 = vector.extract %60[0, 0, 0] : f32 from vector<1x1x1xf32>
    %62 = vector.broadcast %61 : f32 to vector<1x1xf32>
    %63 = arith.addf %57, %62 : vector<1x1xf32>
    %c0_25 = arith.constant 0 : index
    %c0_26 = arith.constant 0 : index
    %64 = vector.load %arg12[%c0_25, %c0_26] : memref<1x1xf32, #tpu.memory_space<vmem>>, vector<1x1xf32>
    tpu.vector_store %arg12[%c0_25, %c0_26], %63 {strides = array<i32>} : memref<1x1xf32, #tpu.memory_space<vmem>>, vector<1x1xf32>,
    %c0_27 = arith.constant 0 : index
    %c0_28 = arith.constant 0 : index
    %65 = vector.load %arg14[%c0_27, %c0_28] : memref<1x1xf32, #tpu.memory_space<vmem>>, vector<1x1xf32>
    %66 = vector.shape_cast %10 : vector<15x1xf32> to vector<1x15x1xf32>
    %cst_29 = arith.constant dense<0.000000e+00> : vector<1xf32>
    %67 = vector.multi_reduction <add>, %66, %cst_29 [1, 2] : vector<1x15x1xf32> to vector<1xf32>
    %68 = vector.shape_cast %67 : vector<1xf32> to vector<1x1x1xf32>
    %69 = vector.extract %68[0, 0, 0] : f32 from vector<1x1x1xf32>
    %70 = vector.broadcast %69 : f32 to vector<1x1xf32>
    %71 = arith.addf %65, %70 : vector<1x1xf32>
    %c0_30 = arith.constant 0 : index
    %c0_31 = arith.constant 0 : index
    %72 = vector.load %arg14[%c0_30, %c0_31] : memref<1x1xf32, #tpu.memory_space<vmem>>, vector<1x1xf32>
    tpu.vector_store %arg14[%c0_30, %c0_31], %71 {strides = array<i32>} : memref<1x1xf32, #tpu.memory_space<vmem>>, vector<1x1xf32>,
    %c0_32 = arith.constant 0 : index
    %c0_33 = arith.constant 0 : index
    %c0_34 = arith.constant 0 : index
    %73 = vector.load %arg6[%c0_32, %c0_33, %c0_34] : memref<1x8x16xf32, #tpu.memory_space<vmem>>, vector<1x8x16xf32>
    %74 = vector.shape_cast %73 : vector<1x8x16xf32> to vector<8x16xf32>
    %c0_35 = arith.constant 0 : index
    %c0_36 = arith.constant 0 : index
    %c0_37 = arith.constant 0 : index
    %75 = vector.load %arg7[%c0_35, %c0_36, %c0_37] : memref<1x8x16xf32, #tpu.memory_space<vmem>>, vector<1x8x16xf32>
    %76 = vector.shape_cast %75 : vector<1x8x16xf32> to vector<8x16xf32>
    %c0_38 = arith.constant 0 : index
    %c0_39 = arith.constant 0 : index
    %c0_40 = arith.constant 0 : index
    %77 = vector.load %arg8[%c0_38, %c0_39, %c0_40] : memref<1x8x16xf32, #tpu.memory_space<vmem>>, vector<1x8x16xf32>
    %78 = vector.shape_cast %77 : vector<1x8x16xf32> to vector<8x16xf32>
    %c0_41 = arith.constant 0 : index
    %c0_42 = arith.constant 0 : index
    %c0_43 = arith.constant 0 : index
    %79 = vector.load %arg9[%c0_41, %c0_42, %c0_43] : memref<1x7x1xf32, #tpu.memory_space<vmem>>, vector<1x7x1xf32>
    %80 = vector.shape_cast %79 : vector<1x7x1xf32> to vector<7x1xf32>
    %c0_44 = arith.constant 0 : index
    %c0_45 = arith.constant 0 : index
    %81 = vector.load %arg10[%c0_44, %c0_45] : memref<32x256xf32, #tpu.memory_space<vmem>>, vector<32x256xf32>
    %82 = vector.extract_strided_slice %74 {offsets = [0, 0], sizes = [7, 16], strides = [1, 1]} : vector<8x16xf32> to vector<7x16xf32>
    %83 = vector.extract_strided_slice %76 {offsets = [0, 0], sizes = [7, 16], strides = [1, 1]} : vector<8x16xf32> to vector<7x16xf32>
    %84 = vector.extract_strided_slice %78 {offsets = [0, 0], sizes = [7, 16], strides = [1, 1]} : vector<8x16xf32> to vector<7x16xf32>
    %85 = tpu.concatenate %82, %83, %84 in 0 : vector<7x16xf32>, vector<7x16xf32>, vector<7x16xf32> -> vector<21x16xf32>
    %86 = vector.extract_strided_slice %81 {offsets = [0, 0], sizes = [16, 256], strides = [1, 1]} : vector<32x256xf32> to vector<16x256xf32>
    %cst_46 = arith.constant dense<0.000000e+00> : vector<21x256xf32>
    %87 = tpu.matmul %85, %86, %cst_46 {dimension_numbers = #tpu.dot_dimension_numbers<[1], [0], [0], [1], [0, 0, 1, 1], [], []>} : vector<21x16xf32>, vector<16x256xf32>, vector<21x256xf32> -> vector<21x256xf32>
    %88 = vector.extract_strided_slice %74 {offsets = [1, 0], sizes = [7, 16], strides = [1, 1]} : vector<8x16xf32> to vector<7x16xf32>
    %89 = vector.extract_strided_slice %76 {offsets = [1, 0], sizes = [7, 16], strides = [1, 1]} : vector<8x16xf32> to vector<7x16xf32>
    %90 = vector.extract_strided_slice %78 {offsets = [1, 0], sizes = [7, 16], strides = [1, 1]} : vector<8x16xf32> to vector<7x16xf32>
    %91 = tpu.concatenate %88, %89, %90 in 0 : vector<7x16xf32>, vector<7x16xf32>, vector<7x16xf32> -> vector<21x16xf32>
    %92 = vector.extract_strided_slice %81 {offsets = [16, 0], sizes = [16, 256], strides = [1, 1]} : vector<32x256xf32> to vector<16x256xf32>
    %cst_47 = arith.constant dense<0.000000e+00> : vector<21x256xf32>
    %93 = tpu.matmul %91, %92, %cst_47 {dimension_numbers = #tpu.dot_dimension_numbers<[1], [0], [0], [1], [0, 0, 1, 1], [], []>} : vector<21x16xf32>, vector<16x256xf32>, vector<21x256xf32> -> vector<21x256xf32>
    %94 = arith.addf %87, %93 : vector<21x256xf32>
    %95 = vector.extract_strided_slice %94 {offsets = [0, 0], sizes = [21, 128], strides = [1, 1]} : vector<21x256xf32> to vector<21x128xf32>
    %96 = vector.extract_strided_slice %94 {offsets = [0, 128], sizes = [21, 128], strides = [1, 1]} : vector<21x256xf32> to vector<21x128xf32>
    %97 = arith.mulf %95, %95 : vector<21x128xf32>
    %98 = arith.mulf %96, %96 : vector<21x128xf32>
    %99 = arith.addf %97, %98 : vector<21x128xf32>
    %100 = vector.extract_strided_slice %99 {offsets = [0, 0], sizes = [7, 128], strides = [1, 1]} : vector<21x128xf32> to vector<7x128xf32>
    %cst_48 = arith.constant 9.99999997E-7 : f32
    %101 = vector.broadcast %cst_48 : f32 to vector<7x128xf32>
    %102 = arith.addf %100, %101 : vector<7x128xf32>
    %103 = vector.extract_strided_slice %99 {offsets = [7, 0], sizes = [7, 128], strides = [1, 1]} : vector<21x128xf32> to vector<7x128xf32>
    %cst_49 = arith.constant 9.99999997E-7 : f32
    %104 = vector.broadcast %cst_49 : f32 to vector<7x128xf32>
    %105 = arith.addf %103, %104 : vector<7x128xf32>
    %106 = vector.extract_strided_slice %99 {offsets = [14, 0], sizes = [7, 128], strides = [1, 1]} : vector<21x128xf32> to vector<7x128xf32>
    %cst_50 = arith.constant dense<0xFF800000> : vector<7xf32>
    %107 = vector.multi_reduction <maximumf>, %106, %cst_50 [1] : vector<7x128xf32> to vector<7xf32>
    %108 = vector.shape_cast %107 : vector<7xf32> to vector<7x1xf32>
    %cst_51 = arith.constant 9.99999997E-7 : f32
    %109 = vector.broadcast %cst_51 : f32 to vector<7x1xf32>
    %110 = arith.cmpf ogt, %108, %109 : vector<7x1xf32>
    %cst_52 = arith.constant 9.99999997E-7 : f32
    %111 = vector.broadcast %cst_52 : f32 to vector<7x1xf32>
    %112 = arith.maximumf %108, %111 : vector<7x1xf32>
    %113 = vector.broadcast %112 : vector<7x1xf32> to vector<7x128xf32>
    %114 = arith.divf %106, %113 : vector<7x128xf32>
    %cst_53 = arith.constant 0.000000e+00 : f32
    %115 = vector.shape_cast %110 : vector<7x1xi1> to vector<7x1xi1>
    %116 = vector.broadcast %115 : vector<7x1xi1> to vector<7x128xi1>
    %117 = vector.broadcast %cst_53 : f32 to vector<7x128xf32>
    %118 = arith.select %116, %114, %117 : vector<7x128xi1>, vector<7x128xf32>
    %119 = arith.divf %102, %105 : vector<7x128xf32>
    %120 = math.log %119 : vector<7x128xf32>
    %121 = arith.mulf %120, %120 : vector<7x128xf32>
    %cst_54 = arith.constant 1.000000e+00 : f32
    %122 = vector.broadcast %cst_54 : f32 to vector<7x128xf32>
    %123 = arith.addf %122, %118 : vector<7x128xf32>
    %124 = arith.mulf %121, %123 : vector<7x128xf32>
    %125 = vector.broadcast %80 : vector<7x1xf32> to vector<7x128xf32>
    %126 = arith.mulf %124, %125 : vector<7x128xf32>
    %c0_55 = arith.constant 0 : index
    %c0_56 = arith.constant 0 : index
    %127 = vector.load %arg13[%c0_55, %c0_56] : memref<1x1xf32, #tpu.memory_space<vmem>>, vector<1x1xf32>
    %128 = vector.shape_cast %126 : vector<7x128xf32> to vector<1x7x128xf32>
    %cst_57 = arith.constant dense<0.000000e+00> : vector<1xf32>
    %129 = vector.multi_reduction <add>, %128, %cst_57 [1, 2] : vector<1x7x128xf32> to vector<1xf32>
    %130 = vector.shape_cast %129 : vector<1xf32> to vector<1x1x1xf32>
    %131 = vector.extract %130[0, 0, 0] : f32 from vector<1x1x1xf32>
    %132 = vector.broadcast %131 : f32 to vector<1x1xf32>
    %133 = arith.addf %127, %132 : vector<1x1xf32>
    %c0_58 = arith.constant 0 : index
    %c0_59 = arith.constant 0 : index
    %134 = vector.load %arg13[%c0_58, %c0_59] : memref<1x1xf32, #tpu.memory_space<vmem>>, vector<1x1xf32>
    tpu.vector_store %arg13[%c0_58, %c0_59], %133 {strides = array<i32>} : memref<1x1xf32, #tpu.memory_space<vmem>>, vector<1x1xf32>,
    %c0_60 = arith.constant 0 : index
    %c0_61 = arith.constant 0 : index
    %135 = vector.load %arg15[%c0_60, %c0_61] : memref<1x1xf32, #tpu.memory_space<vmem>>, vector<1x1xf32>
    %136 = vector.shape_cast %80 : vector<7x1xf32> to vector<1x7x1xf32>
    %cst_62 = arith.constant dense<0.000000e+00> : vector<1xf32>
    %137 = vector.multi_reduction <add>, %136, %cst_62 [1, 2] : vector<1x7x1xf32> to vector<1xf32>
    %138 = vector.shape_cast %137 : vector<1xf32> to vector<1x1x1xf32>
    %139 = vector.extract %138[0, 0, 0] : f32 from vector<1x1x1xf32>
    %140 = vector.broadcast %139 : f32 to vector<1x1xf32>
    %141 = arith.addf %135, %140 : vector<1x1xf32>
    %c0_63 = arith.constant 0 : index
    %c0_64 = arith.constant 0 : index
    %142 = vector.load %arg15[%c0_63, %c0_64] : memref<1x1xf32, #tpu.memory_space<vmem>>, vector<1x1xf32>
    tpu.vector_store %arg15[%c0_63, %c0_64], %141 {strides = array<i32>} : memref<1x1xf32, #tpu.memory_space<vmem>>, vector<1x1xf32>,
    %c1_i32 = arith.constant 1 : i32
    %143 = arith.cmpi eq, %arg0, %c1_i32 : i32
    %144 = arith.extui %143 : i1 to i32
    %c0_i32_65 = arith.constant 0 : i32
    %145 = arith.cmpi ne, %144, %c0_i32_65 : i32
    scf.if %145 {
      %cst_66 = arith.constant 0.000000e+00 : f32
      %146 = vector.broadcast %cst_66 : f32 to vector<1x1xf32>
      %c0_67 = arith.constant 0 : index
      %c0_68 = arith.constant 0 : index
      %147 = vector.load %arg14[%c0_67, %c0_68] : memref<1x1xf32, #tpu.memory_space<vmem>>, vector<1x1xf32>
      %cst_69 = arith.constant 1.000000e+00 : f32
      %148 = vector.broadcast %cst_69 : f32 to vector<1x1xf32>
      %149 = arith.maximumf %147, %148 : vector<1x1xf32>
      %c0_70 = arith.constant 0 : index
      %c0_71 = arith.constant 0 : index
      %150 = vector.load %arg12[%c0_70, %c0_71] : memref<1x1xf32, #tpu.memory_space<vmem>>, vector<1x1xf32>
      %cst_72 = arith.constant 9.000000e+00 : f32
      %151 = vector.broadcast %cst_72 : f32 to vector<1x1xf32>
      %152 = arith.mulf %149, %151 : vector<1x1xf32>
      %153 = arith.divf %150, %152 : vector<1x1xf32>
      %cst_73 = arith.constant 5.000000e-01 : f32
      %154 = vector.broadcast %cst_73 : f32 to vector<1x1xf32>
      %155 = arith.mulf %153, %154 : vector<1x1xf32>
      %156 = arith.addf %146, %155 : vector<1x1xf32>
      %c0_74 = arith.constant 0 : index
      %c0_75 = arith.constant 0 : index
      %157 = vector.load %arg15[%c0_74, %c0_75] : memref<1x1xf32, #tpu.memory_space<vmem>>, vector<1x1xf32>
      %cst_76 = arith.constant 1.000000e+00 : f32
      %158 = vector.broadcast %cst_76 : f32 to vector<1x1xf32>
      %159 = arith.maximumf %157, %158 : vector<1x1xf32>
      %c0_77 = arith.constant 0 : index
      %c0_78 = arith.constant 0 : index
      %160 = vector.load %arg13[%c0_77, %c0_78] : memref<1x1xf32, #tpu.memory_space<vmem>>, vector<1x1xf32>
      %cst_79 = arith.constant 1.700000e+01 : f32
      %161 = vector.broadcast %cst_79 : f32 to vector<1x1xf32>
      %162 = arith.mulf %159, %161 : vector<1x1xf32>
      %163 = arith.divf %160, %162 : vector<1x1xf32>
      %cst_80 = arith.constant 5.000000e-01 : f32
      %164 = vector.broadcast %cst_80 : f32 to vector<1x1xf32>
      %165 = arith.mulf %163, %164 : vector<1x1xf32>
      %166 = arith.addf %156, %165 : vector<1x1xf32>
      %cst_81 = arith.constant 2.000000e+00 : f32
      %167 = vector.broadcast %cst_81 : f32 to vector<1x1xf32>
      %168 = arith.divf %166, %167 : vector<1x1xf32>
      %c0_82 = arith.constant 0 : index
      %c0_83 = arith.constant 0 : index
      %169 = vector.load %arg11[%c0_82, %c0_83] : memref<1x1xf32, #tpu.memory_space<vmem>>, vector<1x1xf32>
      tpu.vector_store %arg11[%c0_82, %c0_83], %168 {strides = array<i32>} : memref<1x1xf32, #tpu.memory_space<vmem>>, vector<1x1xf32>,
    } else {
    }
    return
  }
  func.func @transform_0(%arg0: i32) -> (i32, i32, i32) {
    %c0_i32 = arith.constant 0 : i32
    %c0_i32_0 = arith.constant 0 : i32
    %c0_i32_1 = arith.constant 0 : i32
    return %arg0, %c0_i32, %c0_i32_0 : i32, i32, i32
  }
  func.func @transform_1(%arg0: i32) -> (i32, i32, i32) {
    %c0_i32 = arith.constant 0 : i32
    %c0_i32_0 = arith.constant 0 : i32
    %c0_i32_1 = arith.constant 0 : i32
    return %arg0, %c0_i32, %c0_i32_0 : i32, i32, i32
  }
  func.func @transform_2(%arg0: i32) -> (i32, i32, i32) {
    %c0_i32 = arith.constant 0 : i32
    %c0_i32_0 = arith.constant 0 : i32
    %c0_i32_1 = arith.constant 0 : i32
    return %arg0, %c0_i32, %c0_i32_0 : i32, i32, i32
  }
  func.func @transform_3(%arg0: i32) -> (i32, i32, i32) {
    %c0_i32 = arith.constant 0 : i32
    %c0_i32_0 = arith.constant 0 : i32
    %c0_i32_1 = arith.constant 0 : i32
    return %arg0, %c0_i32, %c0_i32_0 : i32, i32, i32
  }
  func.func @transform_4(%arg0: i32) -> (i32, i32) {
    %c0_i32 = arith.constant 0 : i32
    %c0_i32_0 = arith.constant 0 : i32
    %c0_i32_1 = arith.constant 0 : i32
    return %c0_i32, %c0_i32_0 : i32, i32
  }
  func.func @transform_5(%arg0: i32) -> (i32, i32, i32) {
    %c0_i32 = arith.constant 0 : i32
    %c0_i32_0 = arith.constant 0 : i32
    %c0_i32_1 = arith.constant 0 : i32
    return %arg0, %c0_i32, %c0_i32_0 : i32, i32, i32
  }
  func.func @transform_6(%arg0: i32) -> (i32, i32, i32) {
    %c0_i32 = arith.constant 0 : i32
    %c0_i32_0 = arith.constant 0 : i32
    %c0_i32_1 = arith.constant 0 : i32
    return %arg0, %c0_i32, %c0_i32_0 : i32, i32, i32
  }
  func.func @transform_7(%arg0: i32) -> (i32, i32, i32) {
    %c0_i32 = arith.constant 0 : i32
    %c0_i32_0 = arith.constant 0 : i32
    %c0_i32_1 = arith.constant 0 : i32
    return %arg0, %c0_i32, %c0_i32_0 : i32, i32, i32
  }
  func.func @transform_8(%arg0: i32) -> (i32, i32, i32) {
    %c0_i32 = arith.constant 0 : i32
    %c0_i32_0 = arith.constant 0 : i32
    %c0_i32_1 = arith.constant 0 : i32
    return %arg0, %c0_i32, %c0_i32_0 : i32, i32, i32
  }
  func.func @transform_9(%arg0: i32) -> (i32, i32) {
    %c0_i32 = arith.constant 0 : i32
    %c0_i32_0 = arith.constant 0 : i32
    %c0_i32_1 = arith.constant 0 : i32
    return %c0_i32, %c0_i32_0 : i32, i32
  }
  func.func @transform_10(%arg0: i32) -> (i32, i32) {
    %c0_i32 = arith.constant 0 : i32
    %c0_i32_0 = arith.constant 0 : i32
    %c0_i32_1 = arith.constant 0 : i32
    return %c0_i32, %c0_i32_0 : i32, i32
  }
}

</mosaic_0001>

<llo_original>
// kernel: model_forward.2
$region0: #{model_forward.2}
  #allocation0 [shape = 'u32[]', space=smem, size = 0x4, offset = 0x4, fixed_abs, tag = 'smem constant byte address 0x4 - core index']
  #allocation1 [shape = 'u32[144,128]{1,0:T(1,128)}', space=vmem, size = 0x12000, scoped, tag = 'internal scratch']
  %s0 = inlined_call_operand.vmem [shape: f32[32,8], index: 0, kind: input, shape index: {}]
  %s1 = inlined_call_operand.vmem [shape: f32[32,8], index: 1, kind: input, shape index: {}]
  %s2 = inlined_call_operand.vmem [shape: f32[8,16], index: 2, kind: input, shape index: {}]
  %s3 = inlined_call_operand.vmem [shape: f32[1,16], index: 3, kind: input, shape index: {}]
  %s4 = inlined_call_operand.vmem [shape: f32[16,1], index: 4, kind: input, shape index: {}]
  %s5 = inlined_call_operand.vmem [shape: f32[32,8], index: 5, kind: output, shape index: {}]
  %s6 = sld [smem:[#allocation0]]
  $region30: #{model_forward.2} parent=0
    _
  %s8 = ssub.s32 1, %s6
  %s9 = scalar_select 0, %s8, %s6
  // Predicated region
  $region2: #{model_forward.2} parent=0 // pred_check
    _
  $region3: #{model_forward.2} parent=0 // pred_check_branch
    %11 = sbr.rel (0) target = $region5
  $region4: #{model_forward.2} parent=0 // pred_region
    _
  $region5: #{model_forward.2} parent=0 // pred_fallthru
    _
  // Predicated region
  $region6: #{model_forward.2} parent=0 // pred_check
    _
  $region7: #{model_forward.2} parent=0 // pred_check_branch
    %13 = sbr.rel (0) target = $region9
  $region8: #{model_forward.2} parent=0 // pred_region
    _
  $region9: #{model_forward.2} parent=0 // pred_fallthru
    _
  // Predicated region
  $region10: #{model_forward.2} parent=0 // pred_check
    _
  $region11: #{model_forward.2} parent=0 // pred_check_branch
    %15 = sbr.rel (0) target = $region13
  $region12: #{model_forward.2} parent=0 // pred_region
    _
  $region13: #{model_forward.2} parent=0 // pred_fallthru
    _
  // Predicated region
  $region14: #{model_forward.2} parent=0 // pred_check
    _
  $region15: #{model_forward.2} parent=0 // pred_check_branch
    %17 = sbr.rel (0) target = $region17
  $region16: #{model_forward.2} parent=0 // pred_region
    _
  $region17: #{model_forward.2} parent=0 // pred_fallthru
    _
  // Predicated region
  $region18: #{model_forward.2} parent=0 // pred_check
    _
  $region19: #{model_forward.2} parent=0 // pred_check_branch
    %19 = sbr.rel (0) target = $region21
  $region20: #{model_forward.2} parent=0 // pred_region
    _
  $region21: #{model_forward.2} parent=0 // pred_fallthru
    _
  %v20 = vld [vmem:[%s0] sm:$0xff]
  %v21 = vld [vmem:[%s0 + $0x8] sm:$0xff]
  %v22 = vld [vmem:[%s0 + $0x10] sm:$0xff]
  %v23 = vld [vmem:[%s0 + $0x18] sm:$0xff]
  %v24 = vld [vmem:[%s2] sm:$0xff]
  %v25 = vld [vmem:[%s3] sm:$0x1]
  %v27 = vlaneseq
  %v28 = vshrl.u32 %v27, 7
  %v29 = vsub.s32 0, %v28
  %v30 = vrot.slane %v25, %v29
  %vm32 = vcmask 64512
  %v34 = vsel %vm32, %v20, 0
  %v37 = vsel %vm32, %v21, 0
  %v40 = vsel %vm32, %v22, 0
  %v43 = vsel %vm32, %v23, 0
  %45 = vmatprep.subr.mxu0 0.0
  %46 = vmatpush1.msra.mxu0 %v24
  %47 = vmatprep.subr.mxu0 0.0
  %48 = vmatpush1.msra.mxu0 0.0
  %49 = vmatprep.subr.mxu0 0.0
  %50 = vmatpush1.msra.mxu0 0.0
  %51 = vmatprep.subr.mxu0 0.0
  %52 = vmatpush1.msra.mxu0 0.0
  %53 = vmatprep.subr.mxu0 0.0
  %54 = vmatpush1.msra.mxu0 0.0
  %55 = vmatprep.subr.mxu0 0.0
  %56 = vmatpush1.msra.mxu0 0.0
  %57 = vmatprep.subr.mxu0 0.0
  %58 = vmatpush1.msra.mxu0 0.0
  %59 = vmatprep.subr.mxu0 0.0
  %60 = vmatpush1.msra.mxu0 0.0
  %61 = vmatprep.subr.mxu0 0.0
  %62 = vmatpush1.msra.mxu0 0.0
  %63 = vmatprep.subr.mxu0 0.0
  %64 = vmatpush1.msra.mxu0 0.0
  %65 = vmatprep.subr.mxu0 0.0
  %66 = vmatpush1.msra.mxu0 0.0
  %67 = vmatprep.subr.mxu0 0.0
  %68 = vmatpush1.msra.mxu0 0.0
  %69 = vmatprep.subr.mxu0 0.0
  %70 = vmatpush1.msra.mxu0 0.0
  %71 = vmatprep.subr.mxu0 0.0
  %72 = vmatpush1.msra.mxu0 0.0
  %73 = vmatprep.subr.mxu0 0.0
  %74 = vmatpush1.msra.mxu0 0.0
  %75 = vmatprep.subr.mxu0 0.0
  %76 = vmatpush1.msra.mxu0 0.0
  %77 = vmatprep.subr.mxu0 0.0
  %78 = vmatpush1.msra.mxu0 0.0
  %79 = vmatprep.subr.mxu0 0.0
  %80 = vmatpush1.msra.mxu0 0.0
  %81 = vmatprep.subr.mxu0 0.0
  %82 = vmatpush1.msra.mxu0 0.0
  %83 = vmatprep.subr.mxu0 0.0
  %84 = vmatpush1.msra.mxu0 0.0
  %85 = vmatprep.subr.mxu0 0.0
  %86 = vmatpush1.msra.mxu0 0.0
  %87 = vmatprep.subr.mxu0 0.0
  %88 = vmatpush1.msra.mxu0 0.0
  %89 = vmatprep.subr.mxu0 0.0
  %90 = vmatpush1.msra.mxu0 0.0
  %91 = vmatprep.subr.mxu0 0.0
  %92 = vmatpush1.msra.mxu0 0.0
  %93 = vmatprep.subr.mxu0 0.0
  %94 = vmatpush1.msra.mxu0 0.0
  %95 = vmatprep.subr.mxu0 0.0
  %96 = vmatpush1.msra.mxu0 0.0
  %97 = vmatprep.subr.mxu0 0.0
  %98 = vmatpush1.msra.mxu0 0.0
  %99 = vmatprep.subr.mxu0 0.0
  %100 = vmatpush1.msra.mxu0 0.0
  %101 = vmatprep.subr.mxu0 0.0
  %102 = vmatpush1.msra.mxu0 0.0
  %103 = vmatprep.subr.mxu0 0.0
  %104 = vmatpush1.msra.mxu0 0.0
  %105 = vmatprep.subr.mxu0 0.0
  %106 = vmatpush1.msra.mxu0 0.0
  %107 = vmatprep.subr.mxu0 0.0
  %108 = vmatpush1.msra.mxu0 0.0
  %109 = vmatprep.mubr.f32.mxu0 0.0
  %110 = vmatmul.mubr.f32.gmra.mrb[0].mxu0 %v34
  %v111 = vpop.f32.mrb[0].mxu0
  %v112 = vadd.f32 %v30, %v111
  %v113 = vpop.f32.mrb[0].mxu0
  %114 = vmatprep.mubr.f32.mxu0 0.0
  %115 = vmatmul.mubr.f32.gmra.mrb[0].mxu0 %v37
  %v116 = vpop.f32.mrb[0].mxu0
  %v117 = vadd.f32 %v30, %v116
  %v118 = vpop.f32.mrb[0].mxu0
  %119 = vmatprep.mubr.f32.mxu0 0.0
  %120 = vmatmul.mubr.f32.gmra.mrb[0].mxu0 %v40
  %v121 = vpop.f32.mrb[0].mxu0
  %v122 = vadd.f32 %v30, %v121
  %v123 = vpop.f32.mrb[0].mxu0
  %124 = vmatprep.mubr.f32.mxu0 0.0
  %125 = vmatmul.mubr.f32.gmra.mrb[0].mxu0 %v43
  %v126 = vpop.f32.mrb[0].mxu0
  %v127 = vadd.f32 %v30, %v126
  %v128 = vpop.f32.mrb[0].mxu0
  %129 = vdwg.mxu0
  %v130 = vtanh.pop %v112
  %v131 = vtanh.pop %v117
  %v132 = vtanh.pop %v122
  %v133 = vtanh.pop %v127
  %v134 = vld [vmem:[%s4] sm:$0xff]
  %v135 = vld [vmem:[%s4 + $0x8] sm:$0xff]
  %vm136 = vcmask 130048
  %v138 = vsel %vm136, %v130, 0
  %v141 = vsel %vm136, %v131, 0
  %v144 = vsel %vm136, %v132, 0
  %v147 = vsel %vm136, %v133, 0
  %149 = vmatprep.subr.mxu0 0.0
  %150 = vmatpush1.msra.mxu0 %v134
  %151 = vmatprep.subr.mxu0 0.0
  %152 = vmatpush1.msra.mxu0 %v135
  %153 = vmatprep.subr.mxu0 0.0
  %154 = vmatpush1.msra.mxu0 0.0
  %155 = vmatprep.subr.mxu0 0.0
  %156 = vmatpush1.msra.mxu0 0.0
  %157 = vmatprep.subr.mxu0 0.0
  %158 = vmatpush1.msra.mxu0 0.0
  %159 = vmatprep.subr.mxu0 0.0
  %160 = vmatpush1.msra.mxu0 0.0
  %161 = vmatprep.subr.mxu0 0.0
  %162 = vmatpush1.msra.mxu0 0.0
  %163 = vmatprep.subr.mxu0 0.0
  %164 = vmatpush1.msra.mxu0 0.0
  %165 = vmatprep.subr.mxu0 0.0
  %166 = vmatpush1.msra.mxu0 0.0
  %167 = vmatprep.subr.mxu0 0.0
  %168 = vmatpush1.msra.mxu0 0.0
  %169 = vmatprep.subr.mxu0 0.0
  %170 = vmatpush1.msra.mxu0 0.0
  %171 = vmatprep.subr.mxu0 0.0
  %172 = vmatpush1.msra.mxu0 0.0
  %173 = vmatprep.subr.mxu0 0.0
  %174 = vmatpush1.msra.mxu0 0.0
  %175 = vmatprep.subr.mxu0 0.0
  %176 = vmatpush1.msra.mxu0 0.0
  %177 = vmatprep.subr.mxu0 0.0
  %178 = vmatpush1.msra.mxu0 0.0
  %179 = vmatprep.subr.mxu0 0.0
  %180 = vmatpush1.msra.mxu0 0.0
  %181 = vmatprep.subr.mxu0 0.0
  %182 = vmatpush1.msra.mxu0 0.0
  %183 = vmatprep.subr.mxu0 0.0
  %184 = vmatpush1.msra.mxu0 0.0
  %185 = vmatprep.subr.mxu0 0.0
  %186 = vmatpush1.msra.mxu0 0.0
  %187 = vmatprep.subr.mxu0 0.0
  %188 = vmatpush1.msra.mxu0 0.0
  %189 = vmatprep.subr.mxu0 0.0
  %190 = vmatpush1.msra.mxu0 0.0
  %191 = vmatprep.subr.mxu0 0.0
  %192 = vmatpush1.msra.mxu0 0.0
  %193 = vmatprep.subr.mxu0 0.0
  %194 = vmatpush1.msra.mxu0 0.0
  %195 = vmatprep.subr.mxu0 0.0
  %196 = vmatpush1.msra.mxu0 0.0
  %197 = vmatprep.subr.mxu0 0.0
  %198 = vmatpush1.msra.mxu0 0.0
  %199 = vmatprep.subr.mxu0 0.0
  %200 = vmatpush1.msra.mxu0 0.0
  %201 = vmatprep.subr.mxu0 0.0
  %202 = vmatpush1.msra.mxu0 0.0
  %203 = vmatprep.subr.mxu0 0.0
  %204 = vmatpush1.msra.mxu0 0.0
  %205 = vmatprep.subr.mxu0 0.0
  %206 = vmatpush1.msra.mxu0 0.0
  %207 = vmatprep.subr.mxu0 0.0
  %208 = vmatpush1.msra.mxu0 0.0
  %209 = vmatprep.subr.mxu0 0.0
  %210 = vmatpush1.msra.mxu0 0.0
  %211 = vmatprep.subr.mxu0 0.0
  %212 = vmatpush1.msra.mxu0 0.0
  %213 = vmatprep.mubr.f32.mxu0 0.0
  %214 = vmatmul.mubr.f32.gmra.mrb[0].mxu0 %v138
  %v215 = vpop.f32.mrb[0].mxu0
  %v216 = vadd.f32 0.0, %v215
  %v217 = vpop.f32.mrb[0].mxu0
  %218 = vmatprep.mubr.f32.mxu0 0.0
  %219 = vmatmul.mubr.f32.gmra.mrb[0].mxu0 %v141
  %v220 = vpop.f32.mrb[0].mxu0
  %v221 = vadd.f32 0.0, %v220
  %v222 = vpop.f32.mrb[0].mxu0
  %223 = vmatprep.mubr.f32.mxu0 0.0
  %224 = vmatmul.mubr.f32.gmra.mrb[0].mxu0 %v144
  %v225 = vpop.f32.mrb[0].mxu0
  %v226 = vadd.f32 0.0, %v225
  %v227 = vpop.f32.mrb[0].mxu0
  %228 = vmatprep.mubr.f32.mxu0 0.0
  %229 = vmatmul.mubr.f32.gmra.mrb[0].mxu0 %v147
  %v230 = vpop.f32.mrb[0].mxu0
  %v231 = vadd.f32 0.0, %v230
  %v232 = vpop.f32.mrb[0].mxu0
  %233 = vdwg.mxu0
  %v234 = vld [vmem:[%s1] sm:$0xff]
  %v235 = vld [vmem:[%s1 + $0x8] sm:$0xff]
  %v236 = vld [vmem:[%s1 + $0x10] sm:$0xff]
  %v237 = vld [vmem:[%s1 + $0x18] sm:$0xff]
  %239 = vset.pattern.permute.xlu0 0
  %240 = vperm.xlu0 %239, %v216
  %v241 = vpop.permute.xlu0 %240
  %244 = vset.pattern.permute.xlu0 0
  %245 = vperm.xlu0 %244, %v221
  %v246 = vpop.permute.xlu0 %245
  %249 = vset.pattern.permute.xlu0 0
  %250 = vperm.xlu0 %249, %v226
  %v251 = vpop.permute.xlu0 %250
  %254 = vset.pattern.permute.xlu0 0
  %255 = vperm.xlu0 %254, %v231
  %v256 = vpop.permute.xlu0 %255
  %v258 = vadd.f32 %v234, %v241
  %v259 = vadd.f32 %v235, %v246
  %v260 = vadd.f32 %v236, %v251
  %v261 = vadd.f32 %v237, %v256
  %v262 = vtanh.pop %v258
  %v263 = vtanh.pop %v259
  %v264 = vtanh.pop %v260
  %v265 = vtanh.pop %v261
  %266 = vst.msk [vmem:[%s5] sm:$0xff] %vm32, %v262
  %267 = vst.msk [vmem:[%s5 + $0x8] sm:$0xff] %vm32, %v263
  %268 = vst.msk [vmem:[%s5 + $0x10] sm:$0xff] %vm32, %v264
  %269 = vst.msk [vmem:[%s5 + $0x18] sm:$0xff] %vm32, %v265
  // Predicated region
  $region22: #{model_forward.2} parent=0 // pred_check
    _
  $region23: #{model_forward.2} parent=0 // pred_check_branch
    %271 = sbr.rel (0) target = $region25
  $region24: #{model_forward.2} parent=0 // pred_region
    _
  $region25: #{model_forward.2} parent=0 // pred_fallthru
    _
  // Predicated region
  $region26: #{model_forward.2} parent=0 // pred_check
    _
  $region27: #{model_forward.2} parent=0 // pred_check_branch
    %273 = sbr.rel (0) target = $region29
  $region28: #{model_forward.2} parent=0 // pred_region
    _
  $region29: #{model_forward.2} parent=0 // pred_fallthru
    _

// kernel: model_forward.3
$region0: #{model_forward.3}
  #allocation0 [shape = 'u32[]', space=smem, size = 0x4, offset = 0x4, fixed_abs, tag = 'smem constant byte address 0x4 - core index']
  #allocation1 [shape = 'u32[144,128]{1,0:T(1,128)}', space=vmem, size = 0x12000, scoped, tag = 'internal scratch']
  #allocation2 [shape = 'f32[1,1]{1,0:T(1,128)}', space=vmem, size = 0x200, scoped, tag = 'scratch operand']
  #allocation3 [shape = 'f32[1,1]{1,0:T(1,128)}', space=vmem, size = 0x200, scoped, tag = 'scratch operand']
  #allocation4 [shape = 'f32[1,1]{1,0:T(1,128)}', space=vmem, size = 0x200, scoped, tag = 'scratch operand']
  #allocation5 [shape = 'f32[1,1]{1,0:T(1,128)}', space=vmem, size = 0x200, scoped, tag = 'scratch operand']
  %s0 = inlined_call_operand.vmem [shape: f32[2,16,8], index: 0, kind: input, shape index: {}]
  %s1 = inlined_call_operand.vmem [shape: f32[2,16,8], index: 1, kind: input, shape index: {}]
  %s2 = inlined_call_operand.vmem [shape: f32[2,16,8], index: 2, kind: input, shape index: {}]
  %s3 = inlined_call_operand.vmem [shape: f32[2,15,1], index: 3, kind: input, shape index: {}]
  %s4 = inlined_call_operand.vmem [shape: f32[16,256], index: 4, kind: input, shape index: {}]
  %s5 = inlined_call_operand.vmem [shape: f32[2,8,16], index: 5, kind: input, shape index: {}]
  %s6 = inlined_call_operand.vmem [shape: f32[2,8,16], index: 6, kind: input, shape index: {}]
  %s7 = inlined_call_operand.vmem [shape: f32[2,8,16], index: 7, kind: input, shape index: {}]
  %s8 = inlined_call_operand.vmem [shape: f32[2,7,1], index: 8, kind: input, shape index: {}]
  %s9 = inlined_call_operand.vmem [shape: f32[32,256], index: 9, kind: input, shape index: {}]
  %s10 = inlined_call_operand.hbm [shape: f32[1,1], index: 10, kind: output, shape index: {}]
  %s11 = sld [smem:[#allocation0]]
  $region81: #{model_forward.3} parent=0
    _
  %s13 = ssub.s32 1, %s11
  %s14 = scalar_select 0, %s13, %s11
  $region1: #{model_forward.3} parent=0
    #allocation6 [shape = 'u8[512]{0}', space=vmem, size = 0x400, scoped, tag = 'output window, operand 0, single buffered']
    #allocation7 [shape = 's32[2]{0}', space=sflag, size = 0x8, scoped, tag = 'scoped memory for model_forward.3']
    %15 = vsyncpa [#allocation7], 0
    loop: start=0, step=1, limit=4
    $region2: #{model_forward.3} parent=1 // loop_pre_header
      _
    $region3: #{model_forward.3} parent=1 // loop_header
      %s17 = sphi 0, %s21
      %p18 = scmp.ge.s32.totalorder %s17, 4
      %s27 = sphi 0, %s29
      %s30 = sphi 0, %s27
      %s31 = sphi 0, %s30
      %s47 = sphi 0, %s31
      %s53 = sphi 0, %s55
      %s56 = sphi 0, %s53
      %s57 = sphi 0, %s56
      %s73 = sphi 0, %s57
      %s79 = sphi 0, %s81
      %s82 = sphi 0, %s79
      %s83 = sphi 0, %s82
      %s99 = sphi 0, %s83
      %s105 = sphi 0, %s107
      %s108 = sphi 0, %s105
      %s109 = sphi 0, %s108
      %s125 = sphi 0, %s109
      %s129 = sphi 0, %s129
      %s131 = sphi 0, %s129
      %s132 = sphi 0, %s131
      %s146 = sphi 0, %s132
      %s152 = sphi 0, %s154
      %s155 = sphi 0, %s152
      %s156 = sphi 0, %s155
      %s172 = sphi 0, %s156
      %s178 = sphi 0, %s180
      %s181 = sphi 0, %s178
      %s182 = sphi 0, %s181
      %s198 = sphi 0, %s182
      %s204 = sphi 0, %s206
      %s207 = sphi 0, %s204
      %s208 = sphi 0, %s207
      %s224 = sphi 0, %s208
      %s230 = sphi 0, %s232
      %s233 = sphi 0, %s230
      %s234 = sphi 0, %s233
      %s250 = sphi 0, %s234
      %s254 = sphi 0, %s254
      %s256 = sphi 0, %s254
      %s257 = sphi 0, %s256
      %s271 = sphi 0, %s257
      %s275 = sphi 0, %s275
      %s277 = sphi 0, %s275
      %s278 = sphi 0, %s277
      %s292 = sphi 0, %s278
    $region4: #{model_forward.3} parent=1 // loop_header_branch
      %20 = sbr.rel (%p18) target = $region8
    $region5: #{model_forward.3} parent=1 // loop_body
      %s22 = ssub.s32 %s17, 1
      %s23 = ssub.s32 %s17, 2
      %s24 = sadd.s32 %s17, 1
      %s25 = ssub.s32 %s17, %s24
      %p26 = scmp.eq.s32.totalorder %s25, 0
      %s28 = sadd.s32 %s27, 1
      %s29 = scalar_select %p26, %s27, %s28
      %p32 = pneg %p26
      %p33 = scmp.eq.s32.totalorder %s17, 1
      %p34 = por %p32, %p33
      %p35 = scmp.ne.s32.totalorder %s27, %s30
      %p36 = scmp.eq.s32.totalorder %s17, 0
      %p37 = por %p35, %p36
      %p38 = scmp.ne.s32.totalorder %s27, %s30
      %p39 = scmp.eq.s32.totalorder %s22, 1
      %p40 = por %p38, %p39
      %p41 = scmp.ne.s32.totalorder %s30, %s31
      %p42 = scmp.eq.s32.totalorder %s22, 0
      %p43 = por %p41, %p42
      %p44 = scmp.ne.s32.totalorder %s30, %s31
      %p45 = scmp.eq.s32.totalorder %s23, 1
      %p46 = por %p44, %p45
      %p48 = scmp.ne.s32.totalorder %s31, %s47
      %p49 = scmp.eq.s32.totalorder %s23, 0
      %p50 = por %p48, %p49
      %s51 = ssub.s32 %s17, %s24
      %p52 = scmp.eq.s32.totalorder %s51, 0
      %s54 = sadd.s32 %s53, 1
      %s55 = scalar_select %p52, %s53, %s54
      %p58 = pneg %p52
      %p59 = scmp.eq.s32.totalorder %s17, 1
      %p60 = por %p58, %p59
      %p61 = scmp.ne.s32.totalorder %s53, %s56
      %p62 = scmp.eq.s32.totalorder %s17, 0
      %p63 = por %p61, %p62
      %p64 = scmp.ne.s32.totalorder %s53, %s56
      %p65 = scmp.eq.s32.totalorder %s22, 1
      %p66 = por %p64, %p65
      %p67 = scmp.ne.s32.totalorder %s56, %s57
      %p68 = scmp.eq.s32.totalorder %s22, 0
      %p69 = por %p67, %p68
      %p70 = scmp.ne.s32.totalorder %s56, %s57
      %p71 = scmp.eq.s32.totalorder %s23, 1
      %p72 = por %p70, %p71
      %p74 = scmp.ne.s32.totalorder %s57, %s73
      %p75 = scmp.eq.s32.totalorder %s23, 0
      %p76 = por %p74, %p75
      %s77 = ssub.s32 %s17, %s24
      %p78 = scmp.eq.s32.totalorder %s77, 0
      %s80 = sadd.s32 %s79, 1
      %s81 = scalar_select %p78, %s79, %s80
      %p84 = pneg %p78
      %p85 = scmp.eq.s32.totalorder %s17, 1
      %p86 = por %p84, %p85
      %p87 = scmp.ne.s32.totalorder %s79, %s82
      %p88 = scmp.eq.s32.totalorder %s17, 0
      %p89 = por %p87, %p88
      %p90 = scmp.ne.s32.totalorder %s79, %s82
      %p91 = scmp.eq.s32.totalorder %s22, 1
      %p92 = por %p90, %p91
      %p93 = scmp.ne.s32.totalorder %s82, %s83
      %p94 = scmp.eq.s32.totalorder %s22, 0
      %p95 = por %p93, %p94
      %p96 = scmp.ne.s32.totalorder %s82, %s83
      %p97 = scmp.eq.s32.totalorder %s23, 1
      %p98 = por %p96, %p97
      %p100 = scmp.ne.s32.totalorder %s83, %s99
      %p101 = scmp.eq.s32.totalorder %s23, 0
      %p102 = por %p100, %p101
      %s103 = ssub.s32 %s17, %s24
      %p104 = scmp.eq.s32.totalorder %s103, 0
      %s106 = sadd.s32 %s105, 1
      %s107 = scalar_select %p104, %s105, %s106
      %p110 = pneg %p104
      %p111 = scmp.eq.s32.totalorder %s17, 1
      %p112 = por %p110, %p111
      %p113 = scmp.ne.s32.totalorder %s105, %s108
      %p114 = scmp.eq.s32.totalorder %s17, 0
      %p115 = por %p113, %p114
      %p116 = scmp.ne.s32.totalorder %s105, %s108
      %p117 = scmp.eq.s32.totalorder %s22, 1
      %p118 = por %p116, %p117
      %p119 = scmp.ne.s32.totalorder %s108, %s109
      %p120 = scmp.eq.s32.totalorder %s22, 0
      %p121 = por %p119, %p120
      %p122 = scmp.ne.s32.totalorder %s108, %s109
      %p123 = scmp.eq.s32.totalorder %s23, 1
      %p124 = por %p122, %p123
      %p126 = scmp.ne.s32.totalorder %s109, %s125
      %p127 = scmp.eq.s32.totalorder %s23, 0
      %p128 = por %p126, %p127
      %s130 = sadd.s32 %s129, 1
      %p133 = scmp.eq.s32.totalorder %s17, 1
      %p134 = scmp.ne.s32.totalorder %s129, %s131
      %p135 = scmp.eq.s32.totalorder %s17, 0
      %p136 = por %p134, %p135
      %p137 = scmp.ne.s32.totalorder %s129, %s131
      %p138 = scmp.eq.s32.totalorder %s22, 1
      %p139 = por %p137, %p138
      %p140 = scmp.ne.s32.totalorder %s131, %s132
      %p141 = scmp.eq.s32.totalorder %s22, 0
      %p142 = por %p140, %p141
      %p143 = scmp.ne.s32.totalorder %s131, %s132
      %p144 = scmp.eq.s32.totalorder %s23, 1
      %p145 = por %p143, %p144
      %p147 = scmp.ne.s32.totalorder %s132, %s146
      %p148 = scmp.eq.s32.totalorder %s23, 0
      %p149 = por %p147, %p148
      %s150 = ssub.s32 %s17, %s24
      %p151 = scmp.eq.s32.totalorder %s150, 0
      %s153 = sadd.s32 %s152, 1
      %s154 = scalar_select %p151, %s152, %s153
      %p157 = pneg %p151
      %p158 = scmp.eq.s32.totalorder %s17, 1
      %p159 = por %p157, %p158
      %p160 = scmp.ne.s32.totalorder %s152, %s155
      %p161 = scmp.eq.s32.totalorder %s17, 0
      %p162 = por %p160, %p161
      %p163 = scmp.ne.s32.totalorder %s152, %s155
      %p164 = scmp.eq.s32.totalorder %s22, 1
      %p165 = por %p163, %p164
      %p166 = scmp.ne.s32.totalorder %s155, %s156
      %p167 = scmp.eq.s32.totalorder %s22, 0
      %p168 = por %p166, %p167
      %p169 = scmp.ne.s32.totalorder %s155, %s156
      %p170 = scmp.eq.s32.totalorder %s23, 1
      %p171 = por %p169, %p170
      %p173 = scmp.ne.s32.totalorder %s156, %s172
      %p174 = scmp.eq.s32.totalorder %s23, 0
      %p175 = por %p173, %p174
      %s176 = ssub.s32 %s17, %s24
      %p177 = scmp.eq.s32.totalorder %s176, 0
      %s179 = sadd.s32 %s178, 1
      %s180 = scalar_select %p177, %s178, %s179
      %p183 = pneg %p177
      %p184 = scmp.eq.s32.totalorder %s17, 1
      %p185 = por %p183, %p184
      %p186 = scmp.ne.s32.totalorder %s178, %s181
      %p187 = scmp.eq.s32.totalorder %s17, 0
      %p188 = por %p186, %p187
      %p189 = scmp.ne.s32.totalorder %s178, %s181
      %p190 = scmp.eq.s32.totalorder %s22, 1
      %p191 = por %p189, %p190
      %p192 = scmp.ne.s32.totalorder %s181, %s182
      %p193 = scmp.eq.s32.totalorder %s22, 0
      %p194 = por %p192, %p193
      %p195 = scmp.ne.s32.totalorder %s181, %s182
      %p196 = scmp.eq.s32.totalorder %s23, 1
      %p197 = por %p195, %p196
      %p199 = scmp.ne.s32.totalorder %s182, %s198
      %p200 = scmp.eq.s32.totalorder %s23, 0
      %p201 = por %p199, %p200
      %s202 = ssub.s32 %s17, %s24
      %p203 = scmp.eq.s32.totalorder %s202, 0
      %s205 = sadd.s32 %s204, 1
      %s206 = scalar_select %p203, %s204, %s205
      %p209 = pneg %p203
      %p210 = scmp.eq.s32.totalorder %s17, 1
      %p211 = por %p209, %p210
      %p212 = scmp.ne.s32.totalorder %s204, %s207
      %p213 = scmp.eq.s32.totalorder %s17, 0
      %p214 = por %p212, %p213
      %p215 = scmp.ne.s32.totalorder %s204, %s207
      %p216 = scmp.eq.s32.totalorder %s22, 1
      %p217 = por %p215, %p216
      %p218 = scmp.ne.s32.totalorder %s207, %s208
      %p219 = scmp.eq.s32.totalorder %s22, 0
      %p220 = por %p218, %p219
      %p221 = scmp.ne.s32.totalorder %s207, %s208
      %p222 = scmp.eq.s32.totalorder %s23, 1
      %p223 = por %p221, %p222
      %p225 = scmp.ne.s32.totalorder %s208, %s224
      %p226 = scmp.eq.s32.totalorder %s23, 0
      %p227 = por %p225, %p226
      %s228 = ssub.s32 %s17, %s24
      %p229 = scmp.eq.s32.totalorder %s228, 0
      %s231 = sadd.s32 %s230, 1
      %s232 = scalar_select %p229, %s230, %s231
      %p235 = pneg %p229
      %p236 = scmp.eq.s32.totalorder %s17, 1
      %p237 = por %p235, %p236
      %p238 = scmp.ne.s32.totalorder %s230, %s233
      %p239 = scmp.eq.s32.totalorder %s17, 0
      %p240 = por %p238, %p239
      %p241 = scmp.ne.s32.totalorder %s230, %s233
      %p242 = scmp.eq.s32.totalorder %s22, 1
      %p243 = por %p241, %p242
      %p244 = scmp.ne.s32.totalorder %s233, %s234
      %p245 = scmp.eq.s32.totalorder %s22, 0
      %p246 = por %p244, %p245
      %p247 = scmp.ne.s32.totalorder %s233, %s234
      %p248 = scmp.eq.s32.totalorder %s23, 1
      %p249 = por %p247, %p248
      %p251 = scmp.ne.s32.totalorder %s234, %s250
      %p252 = scmp.eq.s32.totalorder %s23, 0
      %p253 = por %p251, %p252
      %s255 = sadd.s32 %s254, 1
      %p258 = scmp.eq.s32.totalorder %s17, 1
      %p259 = scmp.ne.s32.totalorder %s254, %s256
      %p260 = scmp.eq.s32.totalorder %s17, 0
      %p261 = por %p259, %p260
      %p262 = scmp.ne.s32.totalorder %s254, %s256
      %p263 = scmp.eq.s32.totalorder %s22, 1
      %p264 = por %p262, %p263
      %p265 = scmp.ne.s32.totalorder %s256, %s257
      %p266 = scmp.eq.s32.totalorder %s22, 0
      %p267 = por %p265, %p266
      %p268 = scmp.ne.s32.totalorder %s256, %s257
      %p269 = scmp.eq.s32.totalorder %s23, 1
      %p270 = por %p268, %p269
      %p272 = scmp.ne.s32.totalorder %s257, %s271
      %p273 = scmp.eq.s32.totalorder %s23, 0
      %p274 = por %p272, %p273
      %s276 = sadd.s32 %s275, 1
      %p279 = scmp.eq.s32.totalorder %s17, 1
      %p280 = scmp.ne.s32.totalorder %s275, %s277
      %p281 = scmp.eq.s32.totalorder %s17, 0
      %p282 = por %p280, %p281
      %p283 = scmp.ne.s32.totalorder %s275, %s277
      %p284 = scmp.eq.s32.totalorder %s22, 1
      %p285 = por %p283, %p284
      %p286 = scmp.ne.s32.totalorder %s277, %s278
      %p287 = scmp.eq.s32.totalorder %s22, 0
      %p288 = por %p286, %p287
      %p289 = scmp.ne.s32.totalorder %s277, %s278
      %p290 = scmp.eq.s32.totalorder %s23, 1
      %p291 = por %p289, %p290
      %p293 = scmp.ne.s32.totalorder %s278, %s292
      %p294 = scmp.eq.s32.totalorder %s23, 0
      %p295 = por %p293, %p294
      %p296 = scmp.le.s32.totalorder 1, %s17
      %p297 = scmp.lt.s32.totalorder %s17, 3
      %p298 = pnand %p296, %p297
      %p299 = pneg %p298
      // Predicated region
      $region9: #{model_forward.3} parent=5 // pred_check
        _
      $region10: #{model_forward.3} parent=5 // pred_check_branch
        %301 = sbr.rel (%p298) target = $region12
      $region11: #{model_forward.3} parent=5 // pred_region
        %s302 = ssub.s32 %s17, 1
        // Predicated region
        $region13: #{model_forward.3} parent=11 // pred_check
          %p303 = pneg %p142
        $region14: #{model_forward.3} parent=11 // pred_check_branch
          %305 = sbr.rel (%p303) target = $region16
        $region15: #{model_forward.3} parent=11 // pred_region
          _
        $region16: #{model_forward.3} parent=11 // pred_fallthru
          _
        // Predicated region
        $region17: #{model_forward.3} parent=11 // pred_check
          %p306 = pneg %p267
        $region18: #{model_forward.3} parent=11 // pred_check_branch
          %308 = sbr.rel (%p306) target = $region20
        $region19: #{model_forward.3} parent=11 // pred_region
          _
        $region20: #{model_forward.3} parent=11 // pred_fallthru
          _
      $region12: #{model_forward.3} parent=5 // pred_fallthru
        _
      %p309 = scmp.lt.s32.totalorder %s17, 2
      // Predicated region
      $region21: #{model_forward.3} parent=5 // pred_check
        %p310 = pneg %p309
      $region22: #{model_forward.3} parent=5 // pred_check_branch
        %312 = sbr.rel (%p310) target = $region24
      $region23: #{model_forward.3} parent=5 // pred_region
        // Predicated region
        $region25: #{model_forward.3} parent=23 // pred_check
          %p313 = pneg %p37
        $region26: #{model_forward.3} parent=23 // pred_check_branch
          %315 = sbr.rel (%p313) target = $region28
        $region27: #{model_forward.3} parent=23 // pred_region
          %p316 = scmp.lt.s32.totalorder %s17, 1
          %s317 = scalar_select %p316, %s17, 1
          %s318 = smul.addr %s317, 2
          %s319 = smul.addr %s318, 8
          %s320 = scalar_lea.vmem %s0, %s319
        $region28: #{model_forward.3} parent=23 // pred_fallthru
          _
        // Predicated region
        $region29: #{model_forward.3} parent=23 // pred_check
          %p321 = pneg %p63
        $region30: #{model_forward.3} parent=23 // pred_check_branch
          %323 = sbr.rel (%p321) target = $region32
        $region31: #{model_forward.3} parent=23 // pred_region
          %p324 = scmp.lt.s32.totalorder %s17, 1
          %s325 = scalar_select %p324, %s17, 1
          %s326 = smul.addr %s325, 2
          %s327 = smul.addr %s326, 8
          %s328 = scalar_lea.vmem %s1, %s327
        $region32: #{model_forward.3} parent=23 // pred_fallthru
          _
        // Predicated region
        $region33: #{model_forward.3} parent=23 // pred_check
          %p329 = pneg %p89
        $region34: #{model_forward.3} parent=23 // pred_check_branch
          %331 = sbr.rel (%p329) target = $region36
        $region35: #{model_forward.3} parent=23 // pred_region
          %p332 = scmp.lt.s32.totalorder %s17, 1
          %s333 = scalar_select %p332, %s17, 1
          %s334 = smul.addr %s333, 2
          %s335 = smul.addr %s334, 8
          %s336 = scalar_lea.vmem %s2, %s335
        $region36: #{model_forward.3} parent=23 // pred_fallthru
          _
        // Predicated region
        $region37: #{model_forward.3} parent=23 // pred_check
          %p337 = pneg %p115
        $region38: #{model_forward.3} parent=23 // pred_check_branch
          %339 = sbr.rel (%p337) target = $region40
        $region39: #{model_forward.3} parent=23 // pred_region
          %p340 = scmp.lt.s32.totalorder %s17, 1
          %s341 = scalar_select %p340, %s17, 1
          %s342 = smul.addr %s341, 2
          %s343 = smul.addr %s342, 8
          %s344 = scalar_lea.vmem %s3, %s343
        $region40: #{model_forward.3} parent=23 // pred_fallthru
          _
        // Predicated region
        $region41: #{model_forward.3} parent=23 // pred_check
          %p345 = pneg %p162
        $region42: #{model_forward.3} parent=23 // pred_check_branch
          %347 = sbr.rel (%p345) target = $region44
        $region43: #{model_forward.3} parent=23 // pred_region
          %p348 = scmp.lt.s32.totalorder %s17, 1
          %s349 = scalar_select %p348, %s17, 1
          %s350 = smul.addr %s349, 8
          %s351 = scalar_lea.vmem %s5, %s350
        $region44: #{model_forward.3} parent=23 // pred_fallthru
          _
        // Predicated region
        $region45: #{model_forward.3} parent=23 // pred_check
          %p352 = pneg %p188
        $region46: #{model_forward.3} parent=23 // pred_check_branch
          %354 = sbr.rel (%p352) target = $region48
        $region47: #{model_forward.3} parent=23 // pred_region
          %p355 = scmp.lt.s32.totalorder %s17, 1
          %s356 = scalar_select %p355, %s17, 1
          %s357 = smul.addr %s356, 8
          %s358 = scalar_lea.vmem %s6, %s357
        $region48: #{model_forward.3} parent=23 // pred_fallthru
          _
        // Predicated region
        $region49: #{model_forward.3} parent=23 // pred_check
          %p359 = pneg %p214
        $region50: #{model_forward.3} parent=23 // pred_check_branch
          %361 = sbr.rel (%p359) target = $region52
        $region51: #{model_forward.3} parent=23 // pred_region
          %p362 = scmp.lt.s32.totalorder %s17, 1
          %s363 = scalar_select %p362, %s17, 1
          %s364 = smul.addr %s363, 8
          %s365 = scalar_lea.vmem %s7, %s364
        $region52: #{model_forward.3} parent=23 // pred_fallthru
          _
        // Predicated region
        $region53: #{model_forward.3} parent=23 // pred_check
          %p366 = pneg %p240
        $region54: #{model_forward.3} parent=23 // pred_check_branch
          %368 = sbr.rel (%p366) target = $region56
        $region55: #{model_forward.3} parent=23 // pred_region
          %p369 = scmp.lt.s32.totalorder %s17, 1
          %s370 = scalar_select %p369, %s17, 1
          %s371 = smul.addr %s370, 8
          %s372 = scalar_lea.vmem %s8, %s371
        $region56: #{model_forward.3} parent=23 // pred_fallthru
          _
      $region24: #{model_forward.3} parent=5 // pred_fallthru
        _
      %p373 = scmp.le.s32.totalorder 1, %s17
      %p374 = scmp.lt.s32.totalorder %s17, 3
      %p375 = pnand %p373, %p374
      %p376 = pneg %p375
      // Predicated region
      $region57: #{model_forward.3} parent=5 // pred_check
        _
      $region58: #{model_forward.3} parent=5 // pred_check_branch
        %378 = sbr.rel (%p375) target = $region60
      $region59: #{model_forward.3} parent=5 // pred_region
        %s379 = ssub.s32 %s17, 1
        %p380 = scmp.lt.s32.totalorder %s22, 1
        %s381 = scalar_select %p380, %s22, 1
        %s382 = smul.addr %s381, 2
        %s383 = smul.addr %s382, 8
        %s384 = scalar_lea.vmem %s0, %s383
        %p385 = pneg %p43
        %p386 = pneg %p40
        %p387 = scmp.lt.s32.totalorder %s22, 1
        %s388 = scalar_select %p387, %s22, 1
        %s389 = smul.addr %s388, 2
        %s390 = smul.addr %s389, 8
        %s391 = scalar_lea.vmem %s1, %s390
        %p392 = pneg %p69
        %p393 = pneg %p66
        %p394 = scmp.lt.s32.totalorder %s22, 1
        %s395 = scalar_select %p394, %s22, 1
        %s396 = smul.addr %s395, 2
        %s397 = smul.addr %s396, 8
        %s398 = scalar_lea.vmem %s2, %s397
        %p399 = pneg %p95
        %p400 = pneg %p92
        %p401 = scmp.lt.s32.totalorder %s22, 1
        %s402 = scalar_select %p401, %s22, 1
        %s403 = smul.addr %s402, 2
        %s404 = smul.addr %s403, 8
        %s405 = scalar_lea.vmem %s3, %s404
        %p406 = pneg %p121
        %p407 = pneg %p118
        %p408 = pneg %p142
        %p409 = pneg %p139
        %p410 = scmp.lt.s32.totalorder %s22, 1
        %s411 = scalar_select %p410, %s22, 1
        %s412 = smul.addr %s411, 8
        %s413 = scalar_lea.vmem %s5, %s412
        %p414 = pneg %p168
        %p415 = pneg %p165
        %p416 = scmp.lt.s32.totalorder %s22, 1
        %s417 = scalar_select %p416, %s22, 1
        %s418 = smul.addr %s417, 8
        %s419 = scalar_lea.vmem %s6, %s418
        %p420 = pneg %p194
        %p421 = pneg %p191
        %p422 = scmp.lt.s32.totalorder %s22, 1
        %s423 = scalar_select %p422, %s22, 1
        %s424 = smul.addr %s423, 8
        %s425 = scalar_lea.vmem %s7, %s424
        %p426 = pneg %p220
        %p427 = pneg %p217
        %p428 = scmp.lt.s32.totalorder %s22, 1
        %s429 = scalar_select %p428, %s22, 1
        %s430 = smul.addr %s429, 8
        %s431 = scalar_lea.vmem %s8, %s430
        %p432 = pneg %p246
        %p433 = pneg %p243
        %p434 = pneg %p267
        %p435 = pneg %p264
        %p436 = pneg %p288
        %p437 = pneg %p285
        %p438 = scmp.lt.s32.totalorder %s22, 1
        %s439 = scalar_select %p438, %s22, 1
        %s440 = smul.addr %s439, 2
        %s441 = smul.addr %s440, 8
        %s442 = scalar_lea.vmem %s0, %s441
        %p443 = scmp.lt.s32.totalorder %s22, 1
        %s444 = scalar_select %p443, %s22, 1
        %s445 = smul.addr %s444, 2
        %s446 = smul.addr %s445, 8
        %s447 = scalar_lea.vmem %s1, %s446
        %p448 = scmp.lt.s32.totalorder %s22, 1
        %s449 = scalar_select %p448, %s22, 1
        %s450 = smul.addr %s449, 2
        %s451 = smul.addr %s450, 8
        %s452 = scalar_lea.vmem %s2, %s451
        %p453 = scmp.lt.s32.totalorder %s22, 1
        %s454 = scalar_select %p453, %s22, 1
        %s455 = smul.addr %s454, 2
        %s456 = smul.addr %s455, 8
        %s457 = scalar_lea.vmem %s3, %s456
        %p458 = scmp.lt.s32.totalorder %s22, 1
        %s459 = scalar_select %p458, %s22, 1
        %s460 = smul.addr %s459, 8
        %s461 = scalar_lea.vmem %s5, %s460
        %p462 = scmp.lt.s32.totalorder %s22, 1
        %s463 = scalar_select %p462, %s22, 1
        %s464 = smul.addr %s463, 8
        %s465 = scalar_lea.vmem %s6, %s464
        %p466 = scmp.lt.s32.totalorder %s22, 1
        %s467 = scalar_select %p466, %s22, 1
        %s468 = smul.addr %s467, 8
        %s469 = scalar_lea.vmem %s7, %s468
        %p470 = scmp.lt.s32.totalorder %s22, 1
        %s471 = scalar_select %p470, %s22, 1
        %s472 = smul.addr %s471, 8
        %s473 = scalar_lea.vmem %s8, %s472
        %p474 = scmp.eq.s32.totalorder %s22, 0
        // Predicated region
        $region61: #{model_forward.3} parent=59 // pred_check
          %p475 = pneg %p474
        $region62: #{model_forward.3} parent=59 // pred_check_branch
          %477 = sbr.rel (%p475) target = $region64
        $region63: #{model_forward.3} parent=59 // pred_region
          %vm478 = vcmask 0
          %479 = vst.msk [vmem:[#allocation2] sm:$0x1] %vm478, 0.0
          %480 = vst.msk [vmem:[#allocation4] sm:$0x1] %vm478, 0.0
          %481 = vst.msk [vmem:[#allocation3] sm:$0x1] %vm478, 0.0
          %482 = vst.msk [vmem:[#allocation5] sm:$0x1] %vm478, 0.0
          %483 = vst.msk [vmem:[#allocation6] sm:$0x1] %vm478, 0.0
        $region64: #{model_forward.3} parent=59 // pred_fallthru
          _
        %v484 = vld [vmem:[%s442] sm:$0xff]
        %v485 = vld [vmem:[%s442 + $0x8] sm:$0xff]
        %v486 = vld [vmem:[%s447] sm:$0xff]
        %v487 = vld [vmem:[%s447 + $0x8] sm:$0xff]
        %v488 = vld [vmem:[%s452] sm:$0xff]
        %v489 = vld [vmem:[%s452 + $0x8] sm:$0xff]
        %v490 = vld [vmem:[%s457] sm:$0xff]
        %v491 = vld [vmem:[%s457 + $0x8] sm:$0x7f]
        %v492 = vld [vmem:[%s4] sm:$0xff]
        %v493 = vld [vmem:[%s4 + $0x8] sm:$0xff]
        %v494 = vld [vmem:[%s4 + $0x10] sm:$0xff]
        %v495 = vld [vmem:[%s4 + $0x18] sm:$0xff]
        %vm498 = vcmask 1046528
        %v499 = vrot.slane %v486, 1
        %v500 = vrot.slane %v487, 1
        %v501 = vsel %vm498, %v499, %v500
        %vm506 = vcmask 1045504
        %v507 = vrot.slane %v488, 2
        %v508 = vrot.slane %v489, 2
        %v509 = vsel %vm506, %v507, %v508
        %v511 = vsel %vm498, %v485, %v499
        %v512 = vsel %vm506, %v500, %v507
        %v515 = vrot.slane %v484, 1
        %v516 = vrot.slane %v485, 1
        %v517 = vsel %vm498, %v515, %v516
        %v519 = vrot.slane %v486, 2
        %v520 = vrot.slane %v487, 2
        %v521 = vsel %vm506, %v519, %v520
        %vm524 = vcmask 1044480
        %v525 = vrot.slane %v488, 3
        %v526 = vrot.slane %v489, 3
        %v527 = vsel %vm524, %v525, %v526
        %v529 = vsel %vm498, %v516, %v519
        %v530 = vsel %vm506, %v520, %v525
        %vm531 = vcmask 64512
        %v532 = vsel %vm531, %v517, 0
        %v535 = vsel %vm531, %v529, 0
        %v537 = vsel %vm531, %v521, 0
        %v540 = vsel %vm531, %v530, 0
        %v542 = vsel %vm531, %v527, 0
        %v544 = vsel %vm531, %v526, 0
        %546 = vmatprep.subr.mxu0 %v495
        %547 = vmatpush1.msra.mxu0 %v494
        %548 = vmatprep.subr.mxu0 0.0
        %549 = vmatpush1.msra.mxu0 0.0
        %550 = vmatprep.subr.mxu0 0.0
        %551 = vmatpush1.msra.mxu0 0.0
        %552 = vmatprep.subr.mxu0 0.0
        %553 = vmatpush1.msra.mxu0 0.0
        %554 = vmatprep.subr.mxu0 0.0
        %555 = vmatpush1.msra.mxu0 0.0
        %556 = vmatprep.subr.mxu0 0.0
        %557 = vmatpush1.msra.mxu0 0.0
        %558 = vmatprep.subr.mxu0 0.0
        %559 = vmatpush1.msra.mxu0 0.0
        %560 = vmatprep.subr.mxu0 0.0
        %561 = vmatpush1.msra.mxu0 0.0
        %562 = vmatprep.subr.mxu0 0.0
        %563 = vmatpush1.msra.mxu0 0.0
        %564 = vmatprep.subr.mxu0 0.0
        %565 = vmatpush1.msra.mxu0 0.0
        %566 = vmatprep.subr.mxu0 0.0
        %567 = vmatpush1.msra.mxu0 0.0
        %568 = vmatprep.subr.mxu0 0.0
        %569 = vmatpush1.msra.mxu0 0.0
        %570 = vmatprep.subr.mxu0 0.0
        %571 = vmatpush1.msra.mxu0 0.0
        %572 = vmatprep.subr.mxu0 0.0
        %573 = vmatpush1.msra.mxu0 0.0
        %574 = vmatprep.subr.mxu0 0.0
        %575 = vmatpush1.msra.mxu0 0.0
        %576 = vmatprep.subr.mxu0 0.0
        %577 = vmatpush1.msra.mxu0 0.0
        %578 = vmatprep.subr.mxu0 0.0
        %579 = vmatpush1.msra.mxu0 0.0
        %580 = vmatprep.subr.mxu0 0.0
        %581 = vmatpush1.msra.mxu0 0.0
        %582 = vmatprep.subr.mxu0 0.0
        %583 = vmatpush1.msra.mxu0 0.0
        %584 = vmatprep.subr.mxu0 0.0
        %585 = vmatpush1.msra.mxu0 0.0
        %586 = vmatprep.subr.mxu0 0.0
        %587 = vmatpush1.msra.mxu0 0.0
        %588 = vmatprep.subr.mxu0 0.0
        %589 = vmatpush1.msra.mxu0 0.0
        %590 = vmatprep.subr.mxu0 0.0
        %591 = vmatpush1.msra.mxu0 0.0
        %592 = vmatprep.subr.mxu0 0.0
        %593 = vmatpush1.msra.mxu0 0.0
        %594 = vmatprep.subr.mxu0 0.0
        %595 = vmatpush1.msra.mxu0 0.0
        %596 = vmatprep.subr.mxu0 0.0
        %597 = vmatpush1.msra.mxu0 0.0
        %598 = vmatprep.subr.mxu0 0.0
        %599 = vmatpush1.msra.mxu0 0.0
        %600 = vmatprep.subr.mxu0 0.0
        %601 = vmatpush1.msra.mxu0 0.0
        %602 = vmatprep.subr.mxu0 0.0
        %603 = vmatpush1.msra.mxu0 0.0
        %604 = vmatprep.subr.mxu0 0.0
        %605 = vmatpush1.msra.mxu0 0.0
        %606 = vmatprep.subr.mxu0 0.0
        %607 = vmatpush1.msra.mxu0 0.0
        %608 = vmatprep.subr.mxu0 0.0
        %609 = vmatpush1.msra.mxu0 0.0
        %610 = vmatprep.mubr.f32.mxu0 0.0
        %611 = vmatmul.mubr.f32.gmra.mrb[0].mxu0 %v532
        %v612 = vpop.f32.mrb[0].mxu0
        %v613 = vadd.f32 0.0, %v612
        %v614 = vpop.f32.mrb[0].mxu0
        %v615 = vadd.f32 0.0, %v614
        %616 = vmatprep.mubr.f32.mxu0 0.0
        %617 = vmatmul.mubr.f32.gmra.mrb[0].mxu0 %v535
        %v618 = vpop.f32.mrb[0].mxu0
        %v619 = vadd.f32 0.0, %v618
        %v620 = vpop.f32.mrb[0].mxu0
        %v621 = vadd.f32 0.0, %v620
        %622 = vmatprep.mubr.f32.mxu0 0.0
        %623 = vmatmul.mubr.f32.gmra.mrb[0].mxu0 %v537
        %v624 = vpop.f32.mrb[0].mxu0
        %v625 = vadd.f32 0.0, %v624
        %v626 = vpop.f32.mrb[0].mxu0
        %v627 = vadd.f32 0.0, %v626
        %628 = vmatprep.mubr.f32.mxu0 0.0
        %629 = vmatmul.mubr.f32.gmra.mrb[0].mxu0 %v540
        %v630 = vpop.f32.mrb[0].mxu0
        %v631 = vadd.f32 0.0, %v630
        %v632 = vpop.f32.mrb[0].mxu0
        %v633 = vadd.f32 0.0, %v632
        %634 = vmatprep.mubr.f32.mxu0 0.0
        %635 = vmatmul.mubr.f32.gmra.mrb[0].mxu0 %v542
        %v636 = vpop.f32.mrb[0].mxu0
        %v637 = vadd.f32 0.0, %v636
        %v638 = vpop.f32.mrb[0].mxu0
        %v639 = vadd.f32 0.0, %v638
        %640 = vmatprep.mubr.f32.mxu0 0.0
        %641 = vmatmul.mubr.f32.gmra.mrb[0].mxu0 %v544
        %v642 = vpop.f32.mrb[0].mxu0
        %v643 = vadd.f32 0.0, %v642
        %v644 = vpop.f32.mrb[0].mxu0
        %v645 = vadd.f32 0.0, %v644
        %646 = vdwg.mxu0
        %v647 = vsel %vm531, %v484, 0
        %v650 = vsel %vm531, %v511, 0
        %v652 = vsel %vm531, %v501, 0
        %v655 = vsel %vm531, %v512, 0
        %v657 = vsel %vm531, %v509, 0
        %v659 = vsel %vm531, %v508, 0
        %661 = vmatprep.subr.mxu0 %v493
        %662 = vmatpush1.msra.mxu0 %v492
        %663 = vmatprep.subr.mxu0 0.0
        %664 = vmatpush1.msra.mxu0 0.0
        %665 = vmatprep.subr.mxu0 0.0
        %666 = vmatpush1.msra.mxu0 0.0
        %667 = vmatprep.subr.mxu0 0.0
        %668 = vmatpush1.msra.mxu0 0.0
        %669 = vmatprep.subr.mxu0 0.0
        %670 = vmatpush1.msra.mxu0 0.0
        %671 = vmatprep.subr.mxu0 0.0
        %672 = vmatpush1.msra.mxu0 0.0
        %673 = vmatprep.subr.mxu0 0.0
        %674 = vmatpush1.msra.mxu0 0.0
        %675 = vmatprep.subr.mxu0 0.0
        %676 = vmatpush1.msra.mxu0 0.0
        %677 = vmatprep.subr.mxu0 0.0
        %678 = vmatpush1.msra.mxu0 0.0
        %679 = vmatprep.subr.mxu0 0.0
        %680 = vmatpush1.msra.mxu0 0.0
        %681 = vmatprep.subr.mxu0 0.0
        %682 = vmatpush1.msra.mxu0 0.0
        %683 = vmatprep.subr.mxu0 0.0
        %684 = vmatpush1.msra.mxu0 0.0
        %685 = vmatprep.subr.mxu0 0.0
        %686 = vmatpush1.msra.mxu0 0.0
        %687 = vmatprep.subr.mxu0 0.0
        %688 = vmatpush1.msra.mxu0 0.0
        %689 = vmatprep.subr.mxu0 0.0
        %690 = vmatpush1.msra.mxu0 0.0
        %691 = vmatprep.subr.mxu0 0.0
        %692 = vmatpush1.msra.mxu0 0.0
        %693 = vmatprep.subr.mxu0 0.0
        %694 = vmatpush1.msra.mxu0 0.0
        %695 = vmatprep.subr.mxu0 0.0
        %696 = vmatpush1.msra.mxu0 0.0
        %697 = vmatprep.subr.mxu0 0.0
        %698 = vmatpush1.msra.mxu0 0.0
        %699 = vmatprep.subr.mxu0 0.0
        %700 = vmatpush1.msra.mxu0 0.0
        %701 = vmatprep.subr.mxu0 0.0
        %702 = vmatpush1.msra.mxu0 0.0
        %703 = vmatprep.subr.mxu0 0.0
        %704 = vmatpush1.msra.mxu0 0.0
        %705 = vmatprep.subr.mxu0 0.0
        %706 = vmatpush1.msra.mxu0 0.0
        %707 = vmatprep.subr.mxu0 0.0
        %708 = vmatpush1.msra.mxu0 0.0
        %709 = vmatprep.subr.mxu0 0.0
        %710 = vmatpush1.msra.mxu0 0.0
        %711 = vmatprep.subr.mxu0 0.0
        %712 = vmatpush1.msra.mxu0 0.0
        %713 = vmatprep.subr.mxu0 0.0
        %714 = vmatpush1.msra.mxu0 0.0
        %715 = vmatprep.subr.mxu0 0.0
        %716 = vmatpush1.msra.mxu0 0.0
        %717 = vmatprep.subr.mxu0 0.0
        %718 = vmatpush1.msra.mxu0 0.0
        %719 = vmatprep.subr.mxu0 0.0
        %720 = vmatpush1.msra.mxu0 0.0
        %721 = vmatprep.subr.mxu0 0.0
        %722 = vmatpush1.msra.mxu0 0.0
        %723 = vmatprep.subr.mxu0 0.0
        %724 = vmatpush1.msra.mxu0 0.0
        %725 = vmatprep.mubr.f32.mxu0 0.0
        %726 = vmatmul.mubr.f32.gmra.mrb[0].mxu0 %v647
        %v727 = vpop.f32.mrb[0].mxu0
        %v728 = vadd.f32 %v613, %v727
        %v729 = vpop.f32.mrb[0].mxu0
        %v730 = vadd.f32 %v615, %v729
        %731 = vmatprep.mubr.f32.mxu0 0.0
        %732 = vmatmul.mubr.f32.gmra.mrb[0].mxu0 %v650
        %v733 = vpop.f32.mrb[0].mxu0
        %v734 = vadd.f32 %v619, %v733
        %v735 = vpop.f32.mrb[0].mxu0
        %v736 = vadd.f32 %v621, %v735
        %737 = vmatprep.mubr.f32.mxu0 0.0
        %738 = vmatmul.mubr.f32.gmra.mrb[0].mxu0 %v652
        %v739 = vpop.f32.mrb[0].mxu0
        %v740 = vadd.f32 %v625, %v739
        %v741 = vpop.f32.mrb[0].mxu0
        %v742 = vadd.f32 %v627, %v741
        %743 = vmatprep.mubr.f32.mxu0 0.0
        %744 = vmatmul.mubr.f32.gmra.mrb[0].mxu0 %v655
        %v745 = vpop.f32.mrb[0].mxu0
        %v746 = vadd.f32 %v631, %v745
        %v747 = vpop.f32.mrb[0].mxu0
        %v748 = vadd.f32 %v633, %v747
        %749 = vmatprep.mubr.f32.mxu0 0.0
        %750 = vmatmul.mubr.f32.gmra.mrb[0].mxu0 %v657
        %v751 = vpop.f32.mrb[0].mxu0
        %v752 = vadd.f32 %v637, %v751
        %v753 = vpop.f32.mrb[0].mxu0
        %v754 = vadd.f32 %v639, %v753
        %755 = vmatprep.mubr.f32.mxu0 0.0
        %756 = vmatmul.mubr.f32.gmra.mrb[0].mxu0 %v659
        %v757 = vpop.f32.mrb[0].mxu0
        %v758 = vadd.f32 %v643, %v757
        %v759 = vpop.f32.mrb[0].mxu0
        %v760 = vadd.f32 %v645, %v759
        %761 = vdwg.mxu0
        %v762 = vmul.f32 %v728, %v728
        %v763 = vmul.f32 %v734, %v734
        %v764 = vmul.f32 %v740, %v740
        %v765 = vmul.f32 %v746, %v746
        %v766 = vmul.f32 %v752, %v752
        %v767 = vmul.f32 %v758, %v758
        %v768 = vmul.f32 %v730, %v730
        %v769 = vmul.f32 %v736, %v736
        %v770 = vmul.f32 %v742, %v742
        %v771 = vmul.f32 %v748, %v748
        %v772 = vmul.f32 %v754, %v754
        %v773 = vmul.f32 %v760, %v760
        %v774 = vadd.f32 %v762, %v768
        %v775 = vadd.f32 %v763, %v769
        %v776 = vadd.f32 %v764, %v770
        %v777 = vadd.f32 %v765, %v771
        %v778 = vadd.f32 %v766, %v772
        %v779 = vadd.f32 %v767, %v773
        %v780 = vadd.f32 %v774, 1e-06
        %v781 = vadd.f32 %v775, 1e-06
        %v782 = vadd.f32 %v776, 1e-06
        %v783 = vadd.f32 %v777, 1e-06
        %vm784 = vcmask 1047558
        %v785 = vsel %vm784, %v777, -inf
        %786 = vmax.xlane.f32.xlu0 %v785
        %v787 = vpop.xlane.xlu0 %786
        %788 = vmax.xlane.f32.xlu0 %v778
        %v789 = vpop.xlane.xlu0 %788
        %v790 = vsel %vm524, %v779, -inf
        %791 = vmax.xlane.f32.xlu0 %v790
        %v792 = vpop.xlane.xlu0 %791
        %vm793 = vcmp.gt.f32.partialorder %v787, 1e-06
        %vm794 = vcmp.gt.f32.partialorder %v789, 1e-06
        %vm795 = vcmp.gt.f32.partialorder %v792, 1e-06
        %v796 = vmax.f32 %v787, 1e-06
        %v797 = vmax.f32 %v789, 1e-06
        %v798 = vmax.f32 %v792, 1e-06
        %v799 = vrcp.pop %v796
        %v800 = vmul.f32 %v777, %v799
        %v801 = vrcp.pop %v797
        %v802 = vmul.f32 %v778, %v801
        %v803 = vrcp.pop %v798
        %v804 = vmul.f32 %v779, %v803
        %v805 = vsel %vm793, 1, 0
        %v806 = vsel %vm794, 1, 0
        %v807 = vsel %vm795, 1, 0
        %vm808 = vcmp.eq.s32.totalorder %v805, 1
        %vm809 = vcmp.eq.s32.totalorder %v806, 1
        %vm810 = vcmp.eq.s32.totalorder %v807, 1
        %v811 = vsel %vm808, %v800, 0.0
        %v812 = vsel %vm809, %v802, 0.0
        %v813 = vsel %vm810, %v804, 0.0
        %vm817 = vcmask 1040384
        %v818 = vrot.slane %v781, 7
        %v819 = vrot.slane %v782, 7
        %v820 = vsel %vm817, %v818, %v819
        %v821 = vrot.slane %v783, 7
        %v822 = vsel %vm817, %v819, %v821
        %v825 = vrcp.pop %v820
        %v826 = vmul.f32 %v780, %v825
        %v827 = vrcp.pop %v822
        %v828 = vmul.f32 %v781, %v827
        %v829 = vlog2.pop %v826
        %v830 = vmul.f32 %v829, 0.6931472
        %v831 = vlog2.pop %v828
        %v832 = vmul.f32 %v831, 0.6931472
        %v833 = vmul.f32 %v830, %v830
        %v834 = vmul.f32 %v832, %v832
        %v835 = vadd.f32 %v811, 1.0
        %v836 = vadd.f32 %v812, 1.0
        %v837 = vadd.f32 %v813, 1.0
        %vm841 = vcmask 1041408
        %v842 = vrot.slane %v835, 6
        %v843 = vrot.slane %v836, 6
        %v844 = vsel %vm841, %v842, %v843
        %v845 = vrot.slane %v837, 6
        %v846 = vsel %vm841, %v843, %v845
        %v849 = vmul.f32 %v833, %v844
        %v850 = vmul.f32 %v834, %v846
        %852 = vset.pattern.permute.xlu0 0
        %853 = vperm.xlu0 %852, %v490
        %v854 = vpop.permute.xlu0 %853
        %857 = vset.pattern.permute.xlu0 0
        %858 = vperm.xlu0 %857, %v491
        %v859 = vpop.permute.xlu0 %858
        %v861 = vmul.f32 %v849, %v854
        %v862 = vmul.f32 %v850, %v859
        %v863 = vld [vmem:[#allocation2] sm:$0x1]
        %v864 = vsel %vm498, %v862, 0.0
        %v865 = vadd.f32 %v861, %v864
        %866 = vadd.xlane.f32.xlu0 %v865
        %v867 = vpop.xlane.xlu0 %866
        %v868 = vrot.slane %v867, 4
        %v869 = vadd.f32 %v867, %v868
        %v870 = vrot.slane %v869, 2
        %v871 = vadd.f32 %v869, %v870
        %v872 = vrot.slane %v871, 1
        %v873 = vadd.f32 %v871, %v872
        %s874 = vtos %v873
        %v875 = vstv %s874
        %v876 = vadd.f32 %v863, %v875
        %vm877 = vcmask 0
        %878 = vst.msk [vmem:[#allocation2] sm:$0x1] %vm877, %v876
        %v879 = vld [vmem:[#allocation4] sm:$0x1]
        %vm880 = vcmask 7168
        %v881 = vsel %vm880, %v490, 0.0
        %vm882 = vcmask 6144
        %v883 = vsel %vm882, %v491, 0.0
        %v884 = vadd.f32 %v881, %v883
        %885 = vadd.xlane.f32.xlu0 %v884
        %v886 = vpop.xlane.xlu0 %885
        %v887 = vrot.slane %v886, 4
        %v888 = vadd.f32 %v886, %v887
        %v889 = vrot.slane %v888, 2
        %v890 = vadd.f32 %v888, %v889
        %v891 = vrot.slane %v890, 1
        %v892 = vadd.f32 %v890, %v891
        %s893 = vtos %v892
        %v894 = vstv %s893
        %v895 = vadd.f32 %v879, %v894
        %896 = vst.msk [vmem:[#allocation4] sm:$0x1] %vm877, %v895
        %v897 = vld [vmem:[%s461] sm:$0xff]
        %v898 = vld [vmem:[%s465] sm:$0xff]
        %v899 = vld [vmem:[%s469] sm:$0xff]
        %v900 = vld [vmem:[%s473] sm:$0x7f]
        %v901 = vld [vmem:[%s9] sm:$0xff]
        %v902 = vld [vmem:[%s9 + $0x8] sm:$0xff]
        %v903 = vld [vmem:[%s9 + $0x10] sm:$0xff]
        %v904 = vld [vmem:[%s9 + $0x18] sm:$0xff]
        %v905 = vld [vmem:[%s9 + $0x20] sm:$0xff]
        %v906 = vld [vmem:[%s9 + $0x28] sm:$0xff]
        %v907 = vld [vmem:[%s9 + $0x30] sm:$0xff]
        %v908 = vld [vmem:[%s9 + $0x38] sm:$0xff]
        %v910 = vrot.slane %v898, 1
        %v913 = vrot.slane %v899, 2
        %v915 = vsel %vm498, %v897, %v910
        %v916 = vsel %vm506, %v910, %v913
        %v918 = vrot.slane %v897, 1
        %v920 = vrot.slane %v898, 2
        %v922 = vrot.slane %v899, 3
        %v924 = vsel %vm498, %v918, %v920
        %v925 = vsel %vm506, %v920, %v922
        %vm926 = vcmask 130048
        %v928 = vsel %vm926, %v924, 0
        %v931 = vsel %vm926, %v925, 0
        %v933 = vsel %vm926, %v922, 0
        %935 = vmatprep.subr.mxu0 %v906
        %936 = vmatpush1.msra.mxu0 %v905
        %937 = vmatprep.subr.mxu0 %v908
        %938 = vmatpush1.msra.mxu0 %v907
        %939 = vmatprep.subr.mxu0 0.0
        %940 = vmatpush1.msra.mxu0 0.0
        %941 = vmatprep.subr.mxu0 0.0
        %942 = vmatpush1.msra.mxu0 0.0
        %943 = vmatprep.subr.mxu0 0.0
        %944 = vmatpush1.msra.mxu0 0.0
        %945 = vmatprep.subr.mxu0 0.0
        %946 = vmatpush1.msra.mxu0 0.0
        %947 = vmatprep.subr.mxu0 0.0
        %948 = vmatpush1.msra.mxu0 0.0
        %949 = vmatprep.subr.mxu0 0.0
        %950 = vmatpush1.msra.mxu0 0.0
        %951 = vmatprep.subr.mxu0 0.0
        %952 = vmatpush1.msra.mxu0 0.0
        %953 = vmatprep.subr.mxu0 0.0
        %954 = vmatpush1.msra.mxu0 0.0
        %955 = vmatprep.subr.mxu0 0.0
        %956 = vmatpush1.msra.mxu0 0.0
        %957 = vmatprep.subr.mxu0 0.0
        %958 = vmatpush1.msra.mxu0 0.0
        %959 = vmatprep.subr.mxu0 0.0
        %960 = vmatpush1.msra.mxu0 0.0
        %961 = vmatprep.subr.mxu0 0.0
        %962 = vmatpush1.msra.mxu0 0.0
        %963 = vmatprep.subr.mxu0 0.0
        %964 = vmatpush1.msra.mxu0 0.0
        %965 = vmatprep.subr.mxu0 0.0
        %966 = vmatpush1.msra.mxu0 0.0
        %967 = vmatprep.subr.mxu0 0.0
        %968 = vmatpush1.msra.mxu0 0.0
        %969 = vmatprep.subr.mxu0 0.0
        %970 = vmatpush1.msra.mxu0 0.0
        %971 = vmatprep.subr.mxu0 0.0
        %972 = vmatpush1.msra.mxu0 0.0
        %973 = vmatprep.subr.mxu0 0.0
        %974 = vmatpush1.msra.mxu0 0.0
        %975 = vmatprep.subr.mxu0 0.0
        %976 = vmatpush1.msra.mxu0 0.0
        %977 = vmatprep.subr.mxu0 0.0
        %978 = vmatpush1.msra.mxu0 0.0
        %979 = vmatprep.subr.mxu0 0.0
        %980 = vmatpush1.msra.mxu0 0.0
        %981 = vmatprep.subr.mxu0 0.0
        %982 = vmatpush1.msra.mxu0 0.0
        %983 = vmatprep.subr.mxu0 0.0
        %984 = vmatpush1.msra.mxu0 0.0
        %985 = vmatprep.subr.mxu0 0.0
        %986 = vmatpush1.msra.mxu0 0.0
        %987 = vmatprep.subr.mxu0 0.0
        %988 = vmatpush1.msra.mxu0 0.0
        %989 = vmatprep.subr.mxu0 0.0
        %990 = vmatpush1.msra.mxu0 0.0
        %991 = vmatprep.subr.mxu0 0.0
        %992 = vmatpush1.msra.mxu0 0.0
        %993 = vmatprep.subr.mxu0 0.0
        %994 = vmatpush1.msra.mxu0 0.0
        %995 = vmatprep.subr.mxu0 0.0
        %996 = vmatpush1.msra.mxu0 0.0
        %997 = vmatprep.subr.mxu0 0.0
        %998 = vmatpush1.msra.mxu0 0.0
        %999 = vmatprep.mubr.f32.mxu0 0.0
        %1000 = vmatmul.mubr.f32.gmra.mrb[0].mxu0 %v928
        %v1001 = vpop.f32.mrb[0].mxu0
        %v1002 = vadd.f32 0.0, %v1001
        %v1003 = vpop.f32.mrb[0].mxu0
        %v1004 = vadd.f32 0.0, %v1003
        %1005 = vmatprep.mubr.f32.mxu0 0.0
        %1006 = vmatmul.mubr.f32.gmra.mrb[0].mxu0 %v931
        %v1007 = vpop.f32.mrb[0].mxu0
        %v1008 = vadd.f32 0.0, %v1007
        %v1009 = vpop.f32.mrb[0].mxu0
        %v1010 = vadd.f32 0.0, %v1009
        %1011 = vmatprep.mubr.f32.mxu0 0.0
        %1012 = vmatmul.mubr.f32.gmra.mrb[0].mxu0 %v933
        %v1013 = vpop.f32.mrb[0].mxu0
        %v1014 = vadd.f32 0.0, %v1013
        %v1015 = vpop.f32.mrb[0].mxu0
        %v1016 = vadd.f32 0.0, %v1015
        %1017 = vdwg.mxu0
        %v1019 = vsel %vm926, %v915, 0
        %v1022 = vsel %vm926, %v916, 0
        %v1024 = vsel %vm926, %v913, 0
        %1026 = vmatprep.subr.mxu0 %v902
        %1027 = vmatpush1.msra.mxu0 %v901
        %1028 = vmatprep.subr.mxu0 %v904
        %1029 = vmatpush1.msra.mxu0 %v903
        %1030 = vmatprep.subr.mxu0 0.0
        %1031 = vmatpush1.msra.mxu0 0.0
        %1032 = vmatprep.subr.mxu0 0.0
        %1033 = vmatpush1.msra.mxu0 0.0
        %1034 = vmatprep.subr.mxu0 0.0
        %1035 = vmatpush1.msra.mxu0 0.0
        %1036 = vmatprep.subr.mxu0 0.0
        %1037 = vmatpush1.msra.mxu0 0.0
        %1038 = vmatprep.subr.mxu0 0.0
        %1039 = vmatpush1.msra.mxu0 0.0
        %1040 = vmatprep.subr.mxu0 0.0
        %1041 = vmatpush1.msra.mxu0 0.0
        %1042 = vmatprep.subr.mxu0 0.0
        %1043 = vmatpush1.msra.mxu0 0.0
        %1044 = vmatprep.subr.mxu0 0.0
        %1045 = vmatpush1.msra.mxu0 0.0
        %1046 = vmatprep.subr.mxu0 0.0
        %1047 = vmatpush1.msra.mxu0 0.0
        %1048 = vmatprep.subr.mxu0 0.0
        %1049 = vmatpush1.msra.mxu0 0.0
        %1050 = vmatprep.subr.mxu0 0.0
        %1051 = vmatpush1.msra.mxu0 0.0
        %1052 = vmatprep.subr.mxu0 0.0
        %1053 = vmatpush1.msra.mxu0 0.0
        %1054 = vmatprep.subr.mxu0 0.0
        %1055 = vmatpush1.msra.mxu0 0.0
        %1056 = vmatprep.subr.mxu0 0.0
        %1057 = vmatpush1.msra.mxu0 0.0
        %1058 = vmatprep.subr.mxu0 0.0
        %1059 = vmatpush1.msra.mxu0 0.0
        %1060 = vmatprep.subr.mxu0 0.0
        %1061 = vmatpush1.msra.mxu0 0.0
        %1062 = vmatprep.subr.mxu0 0.0
        %1063 = vmatpush1.msra.mxu0 0.0
        %1064 = vmatprep.subr.mxu0 0.0
        %1065 = vmatpush1.msra.mxu0 0.0
        %1066 = vmatprep.subr.mxu0 0.0
        %1067 = vmatpush1.msra.mxu0 0.0
        %1068 = vmatprep.subr.mxu0 0.0
        %1069 = vmatpush1.msra.mxu0 0.0
        %1070 = vmatprep.subr.mxu0 0.0
        %1071 = vmatpush1.msra.mxu0 0.0
        %1072 = vmatprep.subr.mxu0 0.0
        %1073 = vmatpush1.msra.mxu0 0.0
        %1074 = vmatprep.subr.mxu0 0.0
        %1075 = vmatpush1.msra.mxu0 0.0
        %1076 = vmatprep.subr.mxu0 0.0
        %1077 = vmatpush1.msra.mxu0 0.0
        %1078 = vmatprep.subr.mxu0 0.0
        %1079 = vmatpush1.msra.mxu0 0.0
        %1080 = vmatprep.subr.mxu0 0.0
        %1081 = vmatpush1.msra.mxu0 0.0
        %1082 = vmatprep.subr.mxu0 0.0
        %1083 = vmatpush1.msra.mxu0 0.0
        %1084 = vmatprep.subr.mxu0 0.0
        %1085 = vmatpush1.msra.mxu0 0.0
        %1086 = vmatprep.subr.mxu0 0.0
        %1087 = vmatpush1.msra.mxu0 0.0
        %1088 = vmatprep.subr.mxu0 0.0
        %1089 = vmatpush1.msra.mxu0 0.0
        %1090 = vmatprep.mubr.f32.mxu0 0.0
        %1091 = vmatmul.mubr.f32.gmra.mrb[0].mxu0 %v1019
        %v1092 = vpop.f32.mrb[0].mxu0
        %v1093 = vadd.f32 %v1002, %v1092
        %v1094 = vpop.f32.mrb[0].mxu0
        %v1095 = vadd.f32 %v1004, %v1094
        %1096 = vmatprep.mubr.f32.mxu0 0.0
        %1097 = vmatmul.mubr.f32.gmra.mrb[0].mxu0 %v1022
        %v1098 = vpop.f32.mrb[0].mxu0
        %v1099 = vadd.f32 %v1008, %v1098
        %v1100 = vpop.f32.mrb[0].mxu0
        %v1101 = vadd.f32 %v1010, %v1100
        %1102 = vmatprep.mubr.f32.mxu0 0.0
        %1103 = vmatmul.mubr.f32.gmra.mrb[0].mxu0 %v1024
        %v1104 = vpop.f32.mrb[0].mxu0
        %v1105 = vadd.f32 %v1014, %v1104
        %v1106 = vpop.f32.mrb[0].mxu0
        %v1107 = vadd.f32 %v1016, %v1106
        %1108 = vdwg.mxu0
        %v1109 = vmul.f32 %v1093, %v1093
        %v1110 = vmul.f32 %v1099, %v1099
        %v1111 = vmul.f32 %v1105, %v1105
        %v1112 = vmul.f32 %v1095, %v1095
        %v1113 = vmul.f32 %v1101, %v1101
        %v1114 = vmul.f32 %v1107, %v1107
        %v1115 = vadd.f32 %v1109, %v1112
        %v1116 = vadd.f32 %v1110, %v1113
        %v1117 = vadd.f32 %v1111, %v1114
        %v1118 = vadd.f32 %v1115, 1e-06
        %v1119 = vadd.f32 %v1116, 1e-06
        %v1120 = vsel %vm784, %v1116, -inf
        %1121 = vmax.xlane.f32.xlu0 %v1120
        %v1122 = vpop.xlane.xlu0 %1121
        %v1123 = vsel %vm524, %v1117, -inf
        %1124 = vmax.xlane.f32.xlu0 %v1123
        %v1125 = vpop.xlane.xlu0 %1124
        %vm1126 = vcmp.gt.f32.partialorder %v1122, 1e-06
        %vm1127 = vcmp.gt.f32.partialorder %v1125, 1e-06
        %v1128 = vmax.f32 %v1122, 1e-06
        %v1129 = vmax.f32 %v1125, 1e-06
        %v1130 = vrcp.pop %v1128
        %v1131 = vmul.f32 %v1116, %v1130
        %v1132 = vrcp.pop %v1129
        %v1133 = vmul.f32 %v1117, %v1132
        %v1134 = vsel %vm1126, 1, 0
        %v1135 = vsel %vm1127, 1, 0
        %vm1136 = vcmp.eq.s32.totalorder %v1134, 1
        %vm1137 = vcmp.eq.s32.totalorder %v1135, 1
        %v1138 = vsel %vm1136, %v1131, 0.0
        %v1139 = vsel %vm1137, %v1133, 0.0
        %v1142 = vrot.slane %v1118, 7
        %v1143 = vrot.slane %v1119, 7
        %v1144 = vsel %vm817, %v1142, %v1143
        %v1146 = vrcp.pop %v1144
        %v1147 = vmul.f32 %v1118, %v1146
        %v1148 = vlog2.pop %v1147
        %v1149 = vmul.f32 %v1148, 0.6931472
        %v1150 = vmul.f32 %v1149, %v1149
        %v1151 = vadd.f32 %v1138, 1.0
        %v1152 = vadd.f32 %v1139, 1.0
        %v1155 = vrot.slane %v1151, 6
        %v1156 = vrot.slane %v1152, 6
        %v1157 = vsel %vm841, %v1155, %v1156
        %v1159 = vmul.f32 %v1150, %v1157
        %1161 = vset.pattern.permute.xlu0 0
        %1162 = vperm.xlu0 %1161, %v900
        %v1163 = vpop.permute.xlu0 %1162
        %v1165 = vmul.f32 %v1159, %v1163
        %v1166 = vld [vmem:[#allocation3] sm:$0x1]
        %v1167 = vsel %vm498, %v1165, 0.0
        %1168 = vadd.xlane.f32.xlu0 %v1167
        %v1169 = vpop.xlane.xlu0 %1168
        %v1170 = vrot.slane %v1169, 4
        %v1171 = vadd.f32 %v1169, %v1170
        %v1172 = vrot.slane %v1171, 2
        %v1173 = vadd.f32 %v1171, %v1172
        %v1174 = vrot.slane %v1173, 1
        %v1175 = vadd.f32 %v1173, %v1174
        %s1176 = vtos %v1175
        %v1177 = vstv %s1176
        %v1178 = vadd.f32 %v1166, %v1177
        %1179 = vst.msk [vmem:[#allocation3] sm:$0x1] %vm877, %v1178
        %v1180 = vld [vmem:[#allocation5] sm:$0x1]
        %v1181 = vsel %vm882, %v900, 0.0
        %1182 = vadd.xlane.f32.xlu0 %v1181
        %v1183 = vpop.xlane.xlu0 %1182
        %v1184 = vrot.slane %v1183, 4
        %v1185 = vadd.f32 %v1183, %v1184
        %v1186 = vrot.slane %v1185, 2
        %v1187 = vadd.f32 %v1185, %v1186
        %v1188 = vrot.slane %v1187, 1
        %v1189 = vadd.f32 %v1187, %v1188
        %s1190 = vtos %v1189
        %v1191 = vstv %s1190
        %v1192 = vadd.f32 %v1180, %v1191
        %1193 = vst.msk [vmem:[#allocation5] sm:$0x1] %vm877, %v1192
        %p1194 = scmp.eq.s32.totalorder %s22, 1
        // Predicated region
        $region65: #{model_forward.3} parent=59 // pred_check
          %p1195 = pneg %p1194
        $region66: #{model_forward.3} parent=59 // pred_check_branch
          %1197 = sbr.rel (%p1195) target = $region68
        $region67: #{model_forward.3} parent=59 // pred_region
          %v1198 = vld [vmem:[#allocation4] sm:$0x1]
          %v1199 = vmax.f32 %v1198, 1.0
          %v1200 = vld [vmem:[#allocation2] sm:$0x1]
          %v1201 = vmul.f32 %v1199, 9.0
          %v1202 = vrcp.pop %v1201
          %v1203 = vmul.f32 %v1200, %v1202
          %v1204 = vmul.f32 %v1203, 0.5
          %v1205 = vadd.f32 %v1204, 0.0
          %v1206 = vld [vmem:[#allocation5] sm:$0x1]
          %v1207 = vmax.f32 %v1206, 1.0
          %v1208 = vld [vmem:[#allocation3] sm:$0x1]
          %v1209 = vmul.f32 %v1207, 17.0
          %v1210 = vrcp.pop %v1209
          %v1211 = vmul.f32 %v1208, %v1210
          %v1212 = vmul.f32 %v1211, 0.5
          %v1213 = vadd.f32 %v1205, %v1212
          %v1214 = vrcp.pop 2.0
          %v1215 = vmul.f32 %v1213, %v1214
          %1216 = vst.msk [vmem:[#allocation6] sm:$0x1] %vm877, %v1215
        $region68: #{model_forward.3} parent=59 // pred_fallthru
          _
        // Predicated region
        $region69: #{model_forward.3} parent=59 // pred_check
          %p1217 = pneg %p285
        $region70: #{model_forward.3} parent=59 // pred_check_branch
          %1219 = sbr.rel (%p1217) target = $region72
        $region71: #{model_forward.3} parent=59 // pred_region
          %s1221 = ssub.s32 16, 16
          %1222 = vsyncadd [#allocation7], %s1221
          %s1224 = sshll.u32 [#allocation6], 4
          %s1225 = int_to_ptr.vmem [resolvable:$true] %s1224
          %1227 = dma.vmem_to_hbm [thread:$0]  %s1225, 16, %s10, [#allocation7]
        $region72: #{model_forward.3} parent=59 // pred_fallthru
          _
        // Predicated region
        $region73: #{model_forward.3} parent=59 // pred_check
          %p1228 = pneg %p285
        $region74: #{model_forward.3} parent=59 // pred_check_branch
          %1230 = sbr.rel (%p1228) target = $region76
        $region75: #{model_forward.3} parent=59 // pred_region
          %1231 = dma.done [#allocation7], 16
        $region76: #{model_forward.3} parent=59 // pred_fallthru
          _
      $region60: #{model_forward.3} parent=5 // pred_fallthru
        _
      %p1232 = scmp.le.s32.totalorder 2, %s17
      // Predicated region
      $region77: #{model_forward.3} parent=5 // pred_check
        %p1233 = pneg %p1232
      $region78: #{model_forward.3} parent=5 // pred_check_branch
        %1235 = sbr.rel (%p1233) target = $region80
      $region79: #{model_forward.3} parent=5 // pred_region
        %s1236 = ssub.s32 %s17, 2
      $region80: #{model_forward.3} parent=5 // pred_fallthru
        _
    $region6: #{model_forward.3} parent=1 // loop_footer
      %s21 = sadd.s32 1, %s17
    $region7: #{model_forward.3} parent=1 // loop_footer_branch
      %16 = sbr.rel target = $region3
    $region8: #{model_forward.3} parent=1 // loop_exit
      _
    %1237 = vsyncpa [#allocation7], 1
    %s1238 = scalar_lea.sflag [#allocation7], 1
    %1239 = vsyncpa %s1238, 1

</llo_original>
